<compile_context>
chip_gen: v7x
topology: tpu7x:2x2x1
jax: 0.10.0
libtpu: 0.0.40
codegen_flags: <defaults>
</compile_context>

<pallas_src>
import functools
import math

import jax
import jax.numpy as jnp
from jax import lax
from jax.experimental import pallas as pl
from jax.experimental.pallas import tpu as pltpu


# ----------------------------- fused Pallas kernel ---------------------------

def _fused_attention_kernel(q_ref, img_ref, qw_ref, qb_ref, kvw_ref, kvb_ref,
                            pekw_ref, ow_ref, ob_ref, o_ref,
                            kp_sc, vp_sc, oh_sc, *, num_heads, head_dim):
    """One (batch, query-tile) step of Attention(q, img + pe, img).

    q_ref:   (1, Tq, E) f32   (queries for this tile)
    img_ref: (1, Nk, E) f32   (image tokens; source of both K and V)
    qw:      (E, I)  bf16,  qb: (1, I)  f32
    kvw:     (E, 2I) bf16,  kvb:(1, 2I) f32   ([k_w|v_w], [k_b|v_b])
    pekw:    (Nk, I) f32      (pe_tokens @ k_w, batch-invariant)
    ow:      (I, E)  bf16,  ob: (1, E)  f32
    o_ref:   (1, Tq, E) out dtype
    kp_sc/vp_sc: (Nk, I) bf16 VMEM scratch (cached across query tiles)
    oh_sc:       (Tq, I) bf16 VMEM scratch (concatenated head outputs)
    """
    f32 = jnp.float32
    bf16 = jnp.bfloat16
    internal = num_heads * head_dim

    # --- K/V projection: ONCE per batch, cached in VMEM across query tiles.
    @pl.when(pl.program_id(1) == 0)
    def _project_kv():
        img = img_ref[0].astype(bf16)                                 # (Nk, E)
        kv = jnp.dot(img, kvw_ref[...], preferred_element_type=f32)   # (Nk, 2I)
        kv = kv + kvb_ref[...]
        # k = img + pe  =>  kp = img@kw + kb + pe@kw  (pe@kw precomputed, f32).
        kp_sc[...] = (kv[:, :internal] + pekw_ref[...]).astype(bf16)
        vp_sc[...] = kv[:, internal:].astype(bf16)

    # --- Q projection for this tile; scale folded; single bf16 cast.
    q = q_ref[0].astype(bf16)                                         # (Tq, E)
    qp = jnp.dot(q, qw_ref[...], preferred_element_type=f32) + qb_ref[...]
    qp = (qp * (1.0 / math.sqrt(head_dim))).astype(bf16)              # (Tq, I)

    kp = kp_sc[...]                                                   # (Nk, I) bf16
    vp = vp_sc[...]                                                   # (Nk, I) bf16

    # --- per-head attention; heads are STATIC lane slices of I = H*dh.
    # TODO(synk): at production sizes (Nk=4096, tq>=128) convert this statically
    # unrolled loop to a fori_loop / head grid axis to bound live (Tq,Nk) f32
    # score buffers on v7x's 64 MiB VMEM; at prompt-encoder sizes it fits
    # everywhere.
    for h in range(num_heads):
        lo = h * head_dim
        hi = lo + head_dim
        # scores: contract last dims (no explicit transpose), fp32 accumulate.
        s = lax.dot_general(qp[:, lo:hi], kp[:, lo:hi],
                            (((1,), (1,)), ((), ())),
                            preferred_element_type=f32)               # (Tq, Nk)
        m = jnp.max(s, axis=-1, keepdims=True)
        p = jnp.exp(s - m)
        denom = jnp.sum(p, axis=-1, keepdims=True)
        p = p * pl.reciprocal(denom, approx=True)                     # EUP divide
        oh = jnp.dot(p.astype(bf16), vp[:, lo:hi],
                     preferred_element_type=f32)                      # (Tq, dh)
        oh_sc[:, lo:hi] = oh.astype(bf16)

    # --- single K=I=128 output projection; lane-dense (Tq, 256) store.
    out = jnp.dot(oh_sc[...], ow_ref[...], preferred_element_type=f32)
    o_ref[0] = (out + ob_ref[...]).astype(o_ref.dtype)


# ------------------------------ wrapper --------------------------------------

def init_attention_params(key, embedding_dim, num_heads, downsample_rate=1):
    internal_dim = embedding_dim // downsample_rate
    assert internal_dim % num_heads == 0
    ks = jax.random.split(key, 8)
    s_in = 1.0 / math.sqrt(embedding_dim)
    s_int = 1.0 / math.sqrt(internal_dim)
    return {
        "q_w": jax.random.uniform(ks[0], (embedding_dim, internal_dim), jnp.float32, -s_in, s_in),
        "q_b": jax.random.uniform(ks[1], (internal_dim,), jnp.float32, -s_in, s_in),
        "k_w": jax.random.uniform(ks[2], (embedding_dim, internal_dim), jnp.float32, -s_in, s_in),
        "k_b": jax.random.uniform(ks[3], (internal_dim,), jnp.float32, -s_in, s_in),
        "v_w": jax.random.uniform(ks[4], (embedding_dim, internal_dim), jnp.float32, -s_in, s_in),
        "v_b": jax.random.uniform(ks[5], (internal_dim,), jnp.float32, -s_in, s_in),
        "o_w": jax.random.uniform(ks[6], (internal_dim, embedding_dim), jnp.float32, -s_int, s_int),
        "o_b": jax.random.uniform(ks[7], (embedding_dim,), jnp.float32, -s_int, s_int),
    }


def attention_forward(params, q_tokens, img_tokens, pe_tokens, num_heads):
    """Fused Pallas Attention(q, img + pe, img).

    q_tokens: (B, Nq, E) f32, img_tokens: (B, Nk, E) f32, pe_tokens: (1, Nk, E)
    Returns (B, Nq, E) in q_tokens.dtype.
    """
    B, Nq, E = q_tokens.shape
    Nk = img_tokens.shape[1]
    I = params["q_w"].shape[1]
    assert I % num_heads == 0
    dh = I // num_heads
    out_dtype = q_tokens.dtype
    f32 = jnp.float32
    bf16 = jnp.bfloat16

    # Weights as bf16 MXU operands; [k_w|v_w] concatenated into one 2I-wide
    # matmul (fills the 256-wide MXU on v6e/v7x).  Biases stay f32.
    qw = params["q_w"].astype(bf16)
    kvw = jnp.concatenate([params["k_w"], params["v_w"]], axis=1).astype(bf16)
    ow = params["o_w"].astype(bf16)
    qb = params["q_b"].reshape(1, I).astype(f32)
    kvb = jnp.concatenate([params["k_b"], params["v_b"]]).reshape(1, 2 * I).astype(f32)
    ob = params["o_b"].reshape(1, E).astype(f32)
    # Batch-invariant positional term of the K projection (k = img + pe),
    # computed once in f32; avoids materializing k = img + pe in HBM.
    pekw = (pe_tokens[0] @ params["k_w"]).astype(f32)                 # (Nk, I)

    # Query tiling: amortize per-step overhead; demo Nq is tiny so tq = Nq.
    tq = Nq if Nq <= 256 else 256
    assert Nq % tq == 0, "demo assumes the query tile divides Nq"
    grid = (B, Nq // tq)

    kernel = functools.partial(_fused_attention_kernel,
                               num_heads=num_heads, head_dim=dh)

    cost = pl.CostEstimate(
        flops=int(2 * B * (Nq * E * I            # q projection
                           + Nk * E * 2 * I      # fused k/v projection (per batch)
                           + 2 * num_heads * Nq * Nk * dh   # scores + p@v
                           + Nq * I * E)),       # out projection
        transcendentals=int(B * num_heads * Nq * Nk),
        bytes_accessed=int(4 * B * Nq * E                    # q in (f32)
                           + 4 * B * Nk * E                  # img in (f32)
                           + 2 * (E * I + E * 2 * I + I * E) # bf16 weights
                           + 4 * (3 * I + E + Nk * I)        # f32 biases + pe@kw
                           + 4 * B * Nq * E),                # out (f32)
    )

    in_specs = [
        pl.BlockSpec((1, tq, E), lambda b, m: (b, m, 0)),     # q tokens
        pl.BlockSpec((1, Nk, E), lambda b, m: (b, 0, 0)),     # image tokens
        pl.BlockSpec((E, I), lambda b, m: (0, 0)),            # q_w
        pl.BlockSpec((1, I), lambda b, m: (0, 0)),            # q_b
        pl.BlockSpec((E, 2 * I), lambda b, m: (0, 0)),        # [k_w|v_w]
        pl.BlockSpec((1, 2 * I), lambda b, m: (0, 0)),        # [k_b|v_b]
        pl.BlockSpec((Nk, I), lambda b, m: (0, 0)),           # pe @ k_w
        pl.BlockSpec((I, E), lambda b, m: (0, 0)),            # o_w
        pl.BlockSpec((1, E), lambda b, m: (0, 0)),            # o_b
    ]
    out_specs = pl.BlockSpec((1, tq, E), lambda b, m: (b, m, 0))

    return pl.pallas_call(
        kernel,
        out_shape=jax.ShapeDtypeStruct((B, Nq, E), out_dtype),
        grid=grid,
        in_specs=in_specs,
        out_specs=out_specs,
        scratch_shapes=[pltpu.VMEM((Nk, I), bf16),    # cached K projection
                        pltpu.VMEM((Nk, I), bf16),    # cached V projection
                        pltpu.VMEM((tq, I), bf16)],   # concatenated head outputs
        compiler_params=pltpu.CompilerParams(
            # batch axis parallel (megacore shards it on v7x); query-tile axis
            # arbitrary so the cached K/V scratch stays valid across tiles.
            dimension_semantics=("parallel", "arbitrary"),
            vmem_limit_bytes=48 * 1024 * 1024),
        cost_estimate=cost,
    )(q_tokens, img_tokens, qw, qb, kvw, kvb, pekw, ow, ob)


# ------------------------- pure-JAX reference (fp32) -------------------------

def attention_reference(params, q, k, v, num_heads):
    B, Nq, E = q.shape
    Nk = k.shape[1]
    I = params["q_w"].shape[1]
    dh = I // num_heads
    qp = q @ params["q_w"] + params["q_b"]
    kp = k @ params["k_w"] + params["k_b"]
    vp = v @ params["v_w"] + params["v_b"]
    qh = qp.reshape(B, Nq, num_heads, dh).transpose(0, 2, 1, 3)
    kh = kp.reshape(B, Nk, num_heads, dh).transpose(0, 2, 1, 3)
    vh = vp.reshape(B, Nk, num_heads, dh).transpose(0, 2, 1, 3)
    s = jnp.einsum("bhqd,bhkd->bhqk", qh, kh) / math.sqrt(dh)
    p = jax.nn.softmax(s, axis=-1)
    oh = jnp.einsum("bhqk,bhkd->bhqd", p, vh)
    o = oh.transpose(0, 2, 1, 3).reshape(B, Nq, I)
    return o @ params["o_w"] + params["o_b"]


# ---------------- PromptEncoder glue (plain JAX, elementwise) -----------------

def _pe_encoding(coords01, gauss):
    """Gaussian Fourier features; coords01 in [0,1], shape (..., 2)."""
    c = 2.0 * coords01 - 1.0
    c = c @ gauss
    c = 2.0 * jnp.pi * c
    return jnp.concatenate([jnp.sin(c), jnp.cos(c)], axis=-1)


def get_img_pe(size, gauss):
    h, w = size
    y = (jnp.arange(h, dtype=jnp.float32) + 0.5) / h
    x = (jnp.arange(w, dtype=jnp.float32) + 0.5) / w
    gx, gy = jnp.meshgrid(x, y, indexing="xy")          # (h, w) each
    grid = jnp.stack([gx, gy], axis=-1)                 # (h, w, 2) = (x, y)
    pe = _pe_encoding(grid, gauss)                      # (h, w, 2F)
    return jnp.transpose(pe, (2, 0, 1))[None]           # (1, 2F, h, w)


# ----------------------------------- main -------------------------------------

if __name__ == "__main__":
    B = 2
    embedding_dim = 256            # SAM prompt-encoder transformer width
    num_heads = 8
    downsample_rate = 2            # SAM cross-attention downsample
    feat_h = feat_w = 8            # small stand-in for the 64x64 feature map
    num_points = 8
    img_size = (1024, 1024)

    key = jax.random.PRNGKey(0)
    k_img, k_pts, k_prm, k_gss = jax.random.split(key, 4)

    image_embeddings = jax.random.normal(
        k_img, (B, embedding_dim, feat_h, feat_w), jnp.float32)
    point_coord = jax.random.uniform(
        k_pts, (B, num_points, 2), jnp.float32, 0.0, float(img_size[0]))
    gaussian_matrix = jax.random.normal(
        k_gss, (2, embedding_dim // 2), jnp.float32)

    # PromptEncoder.forward glue: image PE and point-coord normalization.
    image_pe = get_img_pe((feat_h, feat_w), gaussian_matrix)        # (1, E, h, w)
    pc = point_coord
    pc = pc.at[:, :, 0].set((pc[:, :, 0] + 0.5) * 2.0 / img_size[1] - 1.0)
    pc = pc.at[:, :, 1].set((pc[:, :, 1] + 0.5) * 2.0 / img_size[0] - 1.0)
    point_tokens = _pe_encoding((pc + 1.0) * 0.5, gaussian_matrix)  # (B, Np, E)

    # Token views for the transformer's cross-attention (core Pallas kernel).
    img_tokens = image_embeddings.reshape(B, embedding_dim, feat_h * feat_w)
    img_tokens = jnp.transpose(img_tokens, (0, 2, 1))               # (B, hw, E)
    pe_tokens = jnp.transpose(
        image_pe.reshape(1, embedding_dim, feat_h * feat_w), (0, 2, 1))  # (1, hw, E)

    params = init_attention_params(k_prm, embedding_dim, num_heads,
                                   downsample_rate)

    # queries: embedded prompt points; keys: image + positional; values: image.
    out = attention_forward(params, point_tokens, img_tokens, pe_tokens,
                            num_heads)
    out = jax.block_until_ready(out)

    ref = attention_reference(params, point_tokens,
                              img_tokens + jnp.broadcast_to(pe_tokens,
                                                            img_tokens.shape),
                              img_tokens, num_heads)
    assert out.shape == (B, num_points, embedding_dim)
    max_err = float(jnp.max(jnp.abs(out - ref)))
    assert jnp.allclose(out, ref, atol=3e-2, rtol=3e-2), max_err

    print("KERNEL_OK")
</pallas_src>

<mosaic_0001>
module attributes {stable_mosaic.version = 11 : i64} {
  func.func @_fused_attention_kernel(%arg0: i32, %arg1: i32, %arg2: memref<1x8x256xf32, #tpu.memory_space<vmem>>, %arg3: memref<1x64x256xf32, #tpu.memory_space<vmem>>, %arg4: memref<256x128xbf16, #tpu.memory_space<vmem>>, %arg5: memref<1x128xf32, #tpu.memory_space<vmem>>, %arg6: memref<256x256xbf16, #tpu.memory_space<vmem>>, %arg7: memref<1x256xf32, #tpu.memory_space<vmem>>, %arg8: memref<64x128xf32, #tpu.memory_space<vmem>>, %arg9: memref<128x256xbf16, #tpu.memory_space<vmem>>, %arg10: memref<1x256xf32, #tpu.memory_space<vmem>>, %arg11: memref<1x8x256xf32, #tpu.memory_space<vmem>>, %arg12: memref<64x128xbf16, #tpu.memory_space<vmem>>, %arg13: memref<64x128xbf16, #tpu.memory_space<vmem>>, %arg14: memref<8x128xbf16, #tpu.memory_space<vmem>>) attributes {dimension_semantics = [#tpu.dimension_semantics<parallel>, #tpu.dimension_semantics<arbitrary>], iteration_bounds = array<i64: 2, 1>, scalar_prefetch = 0 : i64, scratch_operands = 3 : i64, tpu.core_type = #tpu.core_type<tc>, window_params = [{transform_indices = @transform_0, window_bounds = array<i64: 1, 8, 256>}, {transform_indices = @transform_1, window_bounds = array<i64: 1, 64, 256>}, {pipeline_mode = #tpu.pipeline_mode<synchronous>, transform_indices = @transform_2, window_bounds = array<i64: 256, 128>}, {pipeline_mode = #tpu.pipeline_mode<synchronous>, transform_indices = @transform_3, window_bounds = array<i64: 1, 128>}, {pipeline_mode = #tpu.pipeline_mode<synchronous>, transform_indices = @transform_4, window_bounds = array<i64: 256, 256>}, {pipeline_mode = #tpu.pipeline_mode<synchronous>, transform_indices = @transform_5, window_bounds = array<i64: 1, 256>}, {pipeline_mode = #tpu.pipeline_mode<synchronous>, transform_indices = @transform_6, window_bounds = array<i64: 64, 128>}, {pipeline_mode = #tpu.pipeline_mode<synchronous>, transform_indices = @transform_7, window_bounds = array<i64: 128, 256>}, {pipeline_mode = #tpu.pipeline_mode<synchronous>, transform_indices = @transform_8, window_bounds = array<i64: 1, 256>}, {transform_indices = @transform_9, window_bounds = array<i64: 1, 8, 256>}]} {
    %c0_i32 = arith.constant 0 : i32
    %0 = arith.cmpi eq, %arg1, %c0_i32 : i32
    %1 = arith.extui %0 : i1 to i32
    %c0_i32_0 = arith.constant 0 : i32
    %2 = arith.cmpi ne, %1, %c0_i32_0 : i32
    scf.if %2 {
      %c0_63 = arith.constant 0 : index
      %c0_64 = arith.constant 0 : index
      %c0_65 = arith.constant 0 : index
      %169 = vector.load %arg3[%c0_63, %c0_64, %c0_65] : memref<1x64x256xf32, #tpu.memory_space<vmem>>, vector<1x64x256xf32>
      %170 = vector.shape_cast %169 : vector<1x64x256xf32> to vector<64x256xf32>
      %171 = arith.truncf %170 : vector<64x256xf32> to vector<64x256xbf16>
      %c0_66 = arith.constant 0 : index
      %c0_67 = arith.constant 0 : index
      %172 = vector.load %arg6[%c0_66, %c0_67] : memref<256x256xbf16, #tpu.memory_space<vmem>>, vector<256x256xbf16>
      %cst_68 = arith.constant dense<0.000000e+00> : vector<64x256xf32>
      %173 = tpu.matmul %171, %172, %cst_68 {dimension_numbers = #tpu.dot_dimension_numbers<[1], [0], [0], [1], [0, 0, 1, 1], [], []>} : vector<64x256xbf16>, vector<256x256xbf16>, vector<64x256xf32> -> vector<64x256xf32>
      %c0_69 = arith.constant 0 : index
      %c0_70 = arith.constant 0 : index
      %174 = vector.load %arg7[%c0_69, %c0_70] : memref<1x256xf32, #tpu.memory_space<vmem>>, vector<1x256xf32>
      %175 = vector.broadcast %174 : vector<1x256xf32> to vector<64x256xf32>
      %176 = arith.addf %173, %175 : vector<64x256xf32>
      %177 = vector.extract_strided_slice %176 {offsets = [0, 0], sizes = [64, 128], strides = [1, 1]} : vector<64x256xf32> to vector<64x128xf32>
      %c0_71 = arith.constant 0 : index
      %c0_72 = arith.constant 0 : index
      %178 = vector.load %arg8[%c0_71, %c0_72] : memref<64x128xf32, #tpu.memory_space<vmem>>, vector<64x128xf32>
      %179 = arith.addf %177, %178 : vector<64x128xf32>
      %180 = arith.truncf %179 : vector<64x128xf32> to vector<64x128xbf16>
      %c0_73 = arith.constant 0 : index
      %c0_74 = arith.constant 0 : index
      %181 = vector.load %arg12[%c0_73, %c0_74] : memref<64x128xbf16, #tpu.memory_space<vmem>>, vector<64x128xbf16>
      tpu.vector_store %arg12[%c0_73, %c0_74], %180 {strides = array<i32>} : memref<64x128xbf16, #tpu.memory_space<vmem>>, vector<64x128xbf16>,
      %182 = vector.extract_strided_slice %176 {offsets = [0, 128], sizes = [64, 128], strides = [1, 1]} : vector<64x256xf32> to vector<64x128xf32>
      %183 = arith.truncf %182 : vector<64x128xf32> to vector<64x128xbf16>
      %c0_75 = arith.constant 0 : index
      %c0_76 = arith.constant 0 : index
      %184 = vector.load %arg13[%c0_75, %c0_76] : memref<64x128xbf16, #tpu.memory_space<vmem>>, vector<64x128xbf16>
      tpu.vector_store %arg13[%c0_75, %c0_76], %183 {strides = array<i32>} : memref<64x128xbf16, #tpu.memory_space<vmem>>, vector<64x128xbf16>,
    } else {
    }
    %c0 = arith.constant 0 : index
    %c0_1 = arith.constant 0 : index
    %c0_2 = arith.constant 0 : index
    %3 = vector.load %arg2[%c0, %c0_1, %c0_2] : memref<1x8x256xf32, #tpu.memory_space<vmem>>, vector<1x8x256xf32>
    %4 = vector.shape_cast %3 : vector<1x8x256xf32> to vector<8x256xf32>
    %5 = arith.truncf %4 : vector<8x256xf32> to vector<8x256xbf16>
    %c0_3 = arith.constant 0 : index
    %c0_4 = arith.constant 0 : index
    %6 = vector.load %arg4[%c0_3, %c0_4] : memref<256x128xbf16, #tpu.memory_space<vmem>>, vector<256x128xbf16>
    %cst = arith.constant dense<0.000000e+00> : vector<8x128xf32>
    %7 = tpu.matmul %5, %6, %cst {dimension_numbers = #tpu.dot_dimension_numbers<[1], [0], [0], [1], [0, 0, 1, 1], [], []>} : vector<8x256xbf16>, vector<256x128xbf16>, vector<8x128xf32> -> vector<8x128xf32>
    %c0_5 = arith.constant 0 : index
    %c0_6 = arith.constant 0 : index
    %8 = vector.load %arg5[%c0_5, %c0_6] : memref<1x128xf32, #tpu.memory_space<vmem>>, vector<1x128xf32>
    %9 = vector.broadcast %8 : vector<1x128xf32> to vector<8x128xf32>
    %10 = arith.addf %7, %9 : vector<8x128xf32>
    %cst_7 = arith.constant 2.500000e-01 : f32
    %11 = vector.broadcast %cst_7 : f32 to vector<8x128xf32>
    %12 = arith.mulf %10, %11 : vector<8x128xf32>
    %13 = arith.truncf %12 : vector<8x128xf32> to vector<8x128xbf16>
    %c0_8 = arith.constant 0 : index
    %c0_9 = arith.constant 0 : index
    %14 = vector.load %arg12[%c0_8, %c0_9] : memref<64x128xbf16, #tpu.memory_space<vmem>>, vector<64x128xbf16>
    %c0_10 = arith.constant 0 : index
    %c0_11 = arith.constant 0 : index
    %15 = vector.load %arg13[%c0_10, %c0_11] : memref<64x128xbf16, #tpu.memory_space<vmem>>, vector<64x128xbf16>
    %16 = vector.extract_strided_slice %13 {offsets = [0, 0], sizes = [8, 16], strides = [1, 1]} : vector<8x128xbf16> to vector<8x16xbf16>
    %17 = vector.extract_strided_slice %14 {offsets = [0, 0], sizes = [64, 16], strides = [1, 1]} : vector<64x128xbf16> to vector<64x16xbf16>
    %cst_12 = arith.constant dense<0.000000e+00> : vector<8x64xf32>
    %18 = tpu.matmul %16, %17, %cst_12 {dimension_numbers = #tpu.dot_dimension_numbers<[1], [1], [0], [0], [0, 0, 1, 0], [], []>} : vector<8x16xbf16>, vector<64x16xbf16>, vector<8x64xf32> -> vector<8x64xf32>
    %cst_13 = arith.constant dense<0xFF800000> : vector<8xf32>
    %19 = vector.multi_reduction <maximumf>, %18, %cst_13 [1] : vector<8x64xf32> to vector<8xf32>
    %20 = vector.shape_cast %19 : vector<8xf32> to vector<8x1xf32>
    %21 = vector.broadcast %20 : vector<8x1xf32> to vector<8x64xf32>
    %22 = arith.subf %18, %21 : vector<8x64xf32>
    %23 = math.exp %22 : vector<8x64xf32>
    %cst_14 = arith.constant dense<0.000000e+00> : vector<8xf32>
    %24 = vector.multi_reduction <add>, %23, %cst_14 [1] : vector<8x64xf32> to vector<8xf32>
    %25 = vector.shape_cast %24 : vector<8xf32> to vector<8x1xf32>
    %26 = tpu.reciprocal %25 {approx = true} : vector<8x1xf32> -> vector<8x1xf32>
    %27 = vector.broadcast %26 : vector<8x1xf32> to vector<8x64xf32>
    %28 = arith.mulf %23, %27 : vector<8x64xf32>
    %29 = arith.truncf %28 : vector<8x64xf32> to vector<8x64xbf16>
    %30 = vector.extract_strided_slice %15 {offsets = [0, 0], sizes = [64, 16], strides = [1, 1]} : vector<64x128xbf16> to vector<64x16xbf16>
    %cst_15 = arith.constant dense<0.000000e+00> : vector<8x16xf32>
    %31 = tpu.matmul %29, %30, %cst_15 {dimension_numbers = #tpu.dot_dimension_numbers<[1], [0], [0], [1], [0, 0, 1, 1], [], []>} : vector<8x64xbf16>, vector<64x16xbf16>, vector<8x16xf32> -> vector<8x16xf32>
    %32 = arith.truncf %31 : vector<8x16xf32> to vector<8x16xbf16>
    %c0_16 = arith.constant 0 : index
    %c0_17 = arith.constant 0 : index
    %33 = vector.load %arg14[%c0_16, %c0_17] : memref<8x128xbf16, #tpu.memory_space<vmem>>, vector<8x16xbf16>
    tpu.vector_store %arg14[%c0_16, %c0_17], %32 {strides = array<i32>} : memref<8x128xbf16, #tpu.memory_space<vmem>>, vector<8x16xbf16>,
    %34 = vector.extract_strided_slice %13 {offsets = [0, 16], sizes = [8, 16], strides = [1, 1]} : vector<8x128xbf16> to vector<8x16xbf16>
    %35 = vector.extract_strided_slice %14 {offsets = [0, 16], sizes = [64, 16], strides = [1, 1]} : vector<64x128xbf16> to vector<64x16xbf16>
    %cst_18 = arith.constant dense<0.000000e+00> : vector<8x64xf32>
    %36 = tpu.matmul %34, %35, %cst_18 {dimension_numbers = #tpu.dot_dimension_numbers<[1], [1], [0], [0], [0, 0, 1, 0], [], []>} : vector<8x16xbf16>, vector<64x16xbf16>, vector<8x64xf32> -> vector<8x64xf32>
    %cst_19 = arith.constant dense<0xFF800000> : vector<8xf32>
    %37 = vector.multi_reduction <maximumf>, %36, %cst_19 [1] : vector<8x64xf32> to vector<8xf32>
    %38 = vector.shape_cast %37 : vector<8xf32> to vector<8x1xf32>
    %39 = vector.broadcast %38 : vector<8x1xf32> to vector<8x64xf32>
    %40 = arith.subf %36, %39 : vector<8x64xf32>
    %41 = math.exp %40 : vector<8x64xf32>
    %cst_20 = arith.constant dense<0.000000e+00> : vector<8xf32>
    %42 = vector.multi_reduction <add>, %41, %cst_20 [1] : vector<8x64xf32> to vector<8xf32>
    %43 = vector.shape_cast %42 : vector<8xf32> to vector<8x1xf32>
    %44 = tpu.reciprocal %43 {approx = true} : vector<8x1xf32> -> vector<8x1xf32>
    %45 = vector.broadcast %44 : vector<8x1xf32> to vector<8x64xf32>
    %46 = arith.mulf %41, %45 : vector<8x64xf32>
    %47 = arith.truncf %46 : vector<8x64xf32> to vector<8x64xbf16>
    %48 = vector.extract_strided_slice %15 {offsets = [0, 16], sizes = [64, 16], strides = [1, 1]} : vector<64x128xbf16> to vector<64x16xbf16>
    %cst_21 = arith.constant dense<0.000000e+00> : vector<8x16xf32>
    %49 = tpu.matmul %47, %48, %cst_21 {dimension_numbers = #tpu.dot_dimension_numbers<[1], [0], [0], [1], [0, 0, 1, 1], [], []>} : vector<8x64xbf16>, vector<64x16xbf16>, vector<8x16xf32> -> vector<8x16xf32>
    %50 = arith.truncf %49 : vector<8x16xf32> to vector<8x16xbf16>
    %c0_22 = arith.constant 0 : index
    %c16 = arith.constant 16 : index
    %51 = vector.load %arg14[%c0_22, %c16] : memref<8x128xbf16, #tpu.memory_space<vmem>>, vector<8x16xbf16>
    tpu.vector_store %arg14[%c0_22, %c16], %50 {strides = array<i32>} : memref<8x128xbf16, #tpu.memory_space<vmem>>, vector<8x16xbf16>,
    %52 = vector.extract_strided_slice %13 {offsets = [0, 32], sizes = [8, 16], strides = [1, 1]} : vector<8x128xbf16> to vector<8x16xbf16>
    %53 = vector.extract_strided_slice %14 {offsets = [0, 32], sizes = [64, 16], strides = [1, 1]} : vector<64x128xbf16> to vector<64x16xbf16>
    %cst_23 = arith.constant dense<0.000000e+00> : vector<8x64xf32>
    %54 = tpu.matmul %52, %53, %cst_23 {dimension_numbers = #tpu.dot_dimension_numbers<[1], [1], [0], [0], [0, 0, 1, 0], [], []>} : vector<8x16xbf16>, vector<64x16xbf16>, vector<8x64xf32> -> vector<8x64xf32>
    %cst_24 = arith.constant dense<0xFF800000> : vector<8xf32>
    %55 = vector.multi_reduction <maximumf>, %54, %cst_24 [1] : vector<8x64xf32> to vector<8xf32>
    %56 = vector.shape_cast %55 : vector<8xf32> to vector<8x1xf32>
    %57 = vector.broadcast %56 : vector<8x1xf32> to vector<8x64xf32>
    %58 = arith.subf %54, %57 : vector<8x64xf32>
    %59 = math.exp %58 : vector<8x64xf32>
    %cst_25 = arith.constant dense<0.000000e+00> : vector<8xf32>
    %60 = vector.multi_reduction <add>, %59, %cst_25 [1] : vector<8x64xf32> to vector<8xf32>
    %61 = vector.shape_cast %60 : vector<8xf32> to vector<8x1xf32>
    %62 = tpu.reciprocal %61 {approx = true} : vector<8x1xf32> -> vector<8x1xf32>
    %63 = vector.broadcast %62 : vector<8x1xf32> to vector<8x64xf32>
    %64 = arith.mulf %59, %63 : vector<8x64xf32>
    %65 = arith.truncf %64 : vector<8x64xf32> to vector<8x64xbf16>
    %66 = vector.extract_strided_slice %15 {offsets = [0, 32], sizes = [64, 16], strides = [1, 1]} : vector<64x128xbf16> to vector<64x16xbf16>
    %cst_26 = arith.constant dense<0.000000e+00> : vector<8x16xf32>
    %67 = tpu.matmul %65, %66, %cst_26 {dimension_numbers = #tpu.dot_dimension_numbers<[1], [0], [0], [1], [0, 0, 1, 1], [], []>} : vector<8x64xbf16>, vector<64x16xbf16>, vector<8x16xf32> -> vector<8x16xf32>
    %68 = arith.truncf %67 : vector<8x16xf32> to vector<8x16xbf16>
    %c0_27 = arith.constant 0 : index
    %c32 = arith.constant 32 : index
    %69 = vector.load %arg14[%c0_27, %c32] : memref<8x128xbf16, #tpu.memory_space<vmem>>, vector<8x16xbf16>
    tpu.vector_store %arg14[%c0_27, %c32], %68 {strides = array<i32>} : memref<8x128xbf16, #tpu.memory_space<vmem>>, vector<8x16xbf16>,
    %70 = vector.extract_strided_slice %13 {offsets = [0, 48], sizes = [8, 16], strides = [1, 1]} : vector<8x128xbf16> to vector<8x16xbf16>
    %71 = vector.extract_strided_slice %14 {offsets = [0, 48], sizes = [64, 16], strides = [1, 1]} : vector<64x128xbf16> to vector<64x16xbf16>
    %cst_28 = arith.constant dense<0.000000e+00> : vector<8x64xf32>
    %72 = tpu.matmul %70, %71, %cst_28 {dimension_numbers = #tpu.dot_dimension_numbers<[1], [1], [0], [0], [0, 0, 1, 0], [], []>} : vector<8x16xbf16>, vector<64x16xbf16>, vector<8x64xf32> -> vector<8x64xf32>
    %cst_29 = arith.constant dense<0xFF800000> : vector<8xf32>
    %73 = vector.multi_reduction <maximumf>, %72, %cst_29 [1] : vector<8x64xf32> to vector<8xf32>
    %74 = vector.shape_cast %73 : vector<8xf32> to vector<8x1xf32>
    %75 = vector.broadcast %74 : vector<8x1xf32> to vector<8x64xf32>
    %76 = arith.subf %72, %75 : vector<8x64xf32>
    %77 = math.exp %76 : vector<8x64xf32>
    %cst_30 = arith.constant dense<0.000000e+00> : vector<8xf32>
    %78 = vector.multi_reduction <add>, %77, %cst_30 [1] : vector<8x64xf32> to vector<8xf32>
    %79 = vector.shape_cast %78 : vector<8xf32> to vector<8x1xf32>
    %80 = tpu.reciprocal %79 {approx = true} : vector<8x1xf32> -> vector<8x1xf32>
    %81 = vector.broadcast %80 : vector<8x1xf32> to vector<8x64xf32>
    %82 = arith.mulf %77, %81 : vector<8x64xf32>
    %83 = arith.truncf %82 : vector<8x64xf32> to vector<8x64xbf16>
    %84 = vector.extract_strided_slice %15 {offsets = [0, 48], sizes = [64, 16], strides = [1, 1]} : vector<64x128xbf16> to vector<64x16xbf16>
    %cst_31 = arith.constant dense<0.000000e+00> : vector<8x16xf32>
    %85 = tpu.matmul %83, %84, %cst_31 {dimension_numbers = #tpu.dot_dimension_numbers<[1], [0], [0], [1], [0, 0, 1, 1], [], []>} : vector<8x64xbf16>, vector<64x16xbf16>, vector<8x16xf32> -> vector<8x16xf32>
    %86 = arith.truncf %85 : vector<8x16xf32> to vector<8x16xbf16>
    %c0_32 = arith.constant 0 : index
    %c48 = arith.constant 48 : index
    %87 = vector.load %arg14[%c0_32, %c48] : memref<8x128xbf16, #tpu.memory_space<vmem>>, vector<8x16xbf16>
    tpu.vector_store %arg14[%c0_32, %c48], %86 {strides = array<i32>} : memref<8x128xbf16, #tpu.memory_space<vmem>>, vector<8x16xbf16>,
    %88 = vector.extract_strided_slice %13 {offsets = [0, 64], sizes = [8, 16], strides = [1, 1]} : vector<8x128xbf16> to vector<8x16xbf16>
    %89 = vector.extract_strided_slice %14 {offsets = [0, 64], sizes = [64, 16], strides = [1, 1]} : vector<64x128xbf16> to vector<64x16xbf16>
    %cst_33 = arith.constant dense<0.000000e+00> : vector<8x64xf32>
    %90 = tpu.matmul %88, %89, %cst_33 {dimension_numbers = #tpu.dot_dimension_numbers<[1], [1], [0], [0], [0, 0, 1, 0], [], []>} : vector<8x16xbf16>, vector<64x16xbf16>, vector<8x64xf32> -> vector<8x64xf32>
    %cst_34 = arith.constant dense<0xFF800000> : vector<8xf32>
    %91 = vector.multi_reduction <maximumf>, %90, %cst_34 [1] : vector<8x64xf32> to vector<8xf32>
    %92 = vector.shape_cast %91 : vector<8xf32> to vector<8x1xf32>
    %93 = vector.broadcast %92 : vector<8x1xf32> to vector<8x64xf32>
    %94 = arith.subf %90, %93 : vector<8x64xf32>
    %95 = math.exp %94 : vector<8x64xf32>
    %cst_35 = arith.constant dense<0.000000e+00> : vector<8xf32>
    %96 = vector.multi_reduction <add>, %95, %cst_35 [1] : vector<8x64xf32> to vector<8xf32>
    %97 = vector.shape_cast %96 : vector<8xf32> to vector<8x1xf32>
    %98 = tpu.reciprocal %97 {approx = true} : vector<8x1xf32> -> vector<8x1xf32>
    %99 = vector.broadcast %98 : vector<8x1xf32> to vector<8x64xf32>
    %100 = arith.mulf %95, %99 : vector<8x64xf32>
    %101 = arith.truncf %100 : vector<8x64xf32> to vector<8x64xbf16>
    %102 = vector.extract_strided_slice %15 {offsets = [0, 64], sizes = [64, 16], strides = [1, 1]} : vector<64x128xbf16> to vector<64x16xbf16>
    %cst_36 = arith.constant dense<0.000000e+00> : vector<8x16xf32>
    %103 = tpu.matmul %101, %102, %cst_36 {dimension_numbers = #tpu.dot_dimension_numbers<[1], [0], [0], [1], [0, 0, 1, 1], [], []>} : vector<8x64xbf16>, vector<64x16xbf16>, vector<8x16xf32> -> vector<8x16xf32>
    %104 = arith.truncf %103 : vector<8x16xf32> to vector<8x16xbf16>
    %c0_37 = arith.constant 0 : index
    %c64 = arith.constant 64 : index
    %105 = vector.load %arg14[%c0_37, %c64] : memref<8x128xbf16, #tpu.memory_space<vmem>>, vector<8x16xbf16>
    tpu.vector_store %arg14[%c0_37, %c64], %104 {strides = array<i32>} : memref<8x128xbf16, #tpu.memory_space<vmem>>, vector<8x16xbf16>,
    %106 = vector.extract_strided_slice %13 {offsets = [0, 80], sizes = [8, 16], strides = [1, 1]} : vector<8x128xbf16> to vector<8x16xbf16>
    %107 = vector.extract_strided_slice %14 {offsets = [0, 80], sizes = [64, 16], strides = [1, 1]} : vector<64x128xbf16> to vector<64x16xbf16>
    %cst_38 = arith.constant dense<0.000000e+00> : vector<8x64xf32>
    %108 = tpu.matmul %106, %107, %cst_38 {dimension_numbers = #tpu.dot_dimension_numbers<[1], [1], [0], [0], [0, 0, 1, 0], [], []>} : vector<8x16xbf16>, vector<64x16xbf16>, vector<8x64xf32> -> vector<8x64xf32>
    %cst_39 = arith.constant dense<0xFF800000> : vector<8xf32>
    %109 = vector.multi_reduction <maximumf>, %108, %cst_39 [1] : vector<8x64xf32> to vector<8xf32>
    %110 = vector.shape_cast %109 : vector<8xf32> to vector<8x1xf32>
    %111 = vector.broadcast %110 : vector<8x1xf32> to vector<8x64xf32>
    %112 = arith.subf %108, %111 : vector<8x64xf32>
    %113 = math.exp %112 : vector<8x64xf32>
    %cst_40 = arith.constant dense<0.000000e+00> : vector<8xf32>
    %114 = vector.multi_reduction <add>, %113, %cst_40 [1] : vector<8x64xf32> to vector<8xf32>
    %115 = vector.shape_cast %114 : vector<8xf32> to vector<8x1xf32>
    %116 = tpu.reciprocal %115 {approx = true} : vector<8x1xf32> -> vector<8x1xf32>
    %117 = vector.broadcast %116 : vector<8x1xf32> to vector<8x64xf32>
    %118 = arith.mulf %113, %117 : vector<8x64xf32>
    %119 = arith.truncf %118 : vector<8x64xf32> to vector<8x64xbf16>
    %120 = vector.extract_strided_slice %15 {offsets = [0, 80], sizes = [64, 16], strides = [1, 1]} : vector<64x128xbf16> to vector<64x16xbf16>
    %cst_41 = arith.constant dense<0.000000e+00> : vector<8x16xf32>
    %121 = tpu.matmul %119, %120, %cst_41 {dimension_numbers = #tpu.dot_dimension_numbers<[1], [0], [0], [1], [0, 0, 1, 1], [], []>} : vector<8x64xbf16>, vector<64x16xbf16>, vector<8x16xf32> -> vector<8x16xf32>
    %122 = arith.truncf %121 : vector<8x16xf32> to vector<8x16xbf16>
    %c0_42 = arith.constant 0 : index
    %c80 = arith.constant 80 : index
    %123 = vector.load %arg14[%c0_42, %c80] : memref<8x128xbf16, #tpu.memory_space<vmem>>, vector<8x16xbf16>
    tpu.vector_store %arg14[%c0_42, %c80], %122 {strides = array<i32>} : memref<8x128xbf16, #tpu.memory_space<vmem>>, vector<8x16xbf16>,
    %124 = vector.extract_strided_slice %13 {offsets = [0, 96], sizes = [8, 16], strides = [1, 1]} : vector<8x128xbf16> to vector<8x16xbf16>
    %125 = vector.extract_strided_slice %14 {offsets = [0, 96], sizes = [64, 16], strides = [1, 1]} : vector<64x128xbf16> to vector<64x16xbf16>
    %cst_43 = arith.constant dense<0.000000e+00> : vector<8x64xf32>
    %126 = tpu.matmul %124, %125, %cst_43 {dimension_numbers = #tpu.dot_dimension_numbers<[1], [1], [0], [0], [0, 0, 1, 0], [], []>} : vector<8x16xbf16>, vector<64x16xbf16>, vector<8x64xf32> -> vector<8x64xf32>
    %cst_44 = arith.constant dense<0xFF800000> : vector<8xf32>
    %127 = vector.multi_reduction <maximumf>, %126, %cst_44 [1] : vector<8x64xf32> to vector<8xf32>
    %128 = vector.shape_cast %127 : vector<8xf32> to vector<8x1xf32>
    %129 = vector.broadcast %128 : vector<8x1xf32> to vector<8x64xf32>
    %130 = arith.subf %126, %129 : vector<8x64xf32>
    %131 = math.exp %130 : vector<8x64xf32>
    %cst_45 = arith.constant dense<0.000000e+00> : vector<8xf32>
    %132 = vector.multi_reduction <add>, %131, %cst_45 [1] : vector<8x64xf32> to vector<8xf32>
    %133 = vector.shape_cast %132 : vector<8xf32> to vector<8x1xf32>
    %134 = tpu.reciprocal %133 {approx = true} : vector<8x1xf32> -> vector<8x1xf32>
    %135 = vector.broadcast %134 : vector<8x1xf32> to vector<8x64xf32>
    %136 = arith.mulf %131, %135 : vector<8x64xf32>
    %137 = arith.truncf %136 : vector<8x64xf32> to vector<8x64xbf16>
    %138 = vector.extract_strided_slice %15 {offsets = [0, 96], sizes = [64, 16], strides = [1, 1]} : vector<64x128xbf16> to vector<64x16xbf16>
    %cst_46 = arith.constant dense<0.000000e+00> : vector<8x16xf32>
    %139 = tpu.matmul %137, %138, %cst_46 {dimension_numbers = #tpu.dot_dimension_numbers<[1], [0], [0], [1], [0, 0, 1, 1], [], []>} : vector<8x64xbf16>, vector<64x16xbf16>, vector<8x16xf32> -> vector<8x16xf32>
    %140 = arith.truncf %139 : vector<8x16xf32> to vector<8x16xbf16>
    %c0_47 = arith.constant 0 : index
    %c96 = arith.constant 96 : index
    %141 = vector.load %arg14[%c0_47, %c96] : memref<8x128xbf16, #tpu.memory_space<vmem>>, vector<8x16xbf16>
    tpu.vector_store %arg14[%c0_47, %c96], %140 {strides = array<i32>} : memref<8x128xbf16, #tpu.memory_space<vmem>>, vector<8x16xbf16>,
    %142 = vector.extract_strided_slice %13 {offsets = [0, 112], sizes = [8, 16], strides = [1, 1]} : vector<8x128xbf16> to vector<8x16xbf16>
    %143 = vector.extract_strided_slice %14 {offsets = [0, 112], sizes = [64, 16], strides = [1, 1]} : vector<64x128xbf16> to vector<64x16xbf16>
    %cst_48 = arith.constant dense<0.000000e+00> : vector<8x64xf32>
    %144 = tpu.matmul %142, %143, %cst_48 {dimension_numbers = #tpu.dot_dimension_numbers<[1], [1], [0], [0], [0, 0, 1, 0], [], []>} : vector<8x16xbf16>, vector<64x16xbf16>, vector<8x64xf32> -> vector<8x64xf32>
    %cst_49 = arith.constant dense<0xFF800000> : vector<8xf32>
    %145 = vector.multi_reduction <maximumf>, %144, %cst_49 [1] : vector<8x64xf32> to vector<8xf32>
    %146 = vector.shape_cast %145 : vector<8xf32> to vector<8x1xf32>
    %147 = vector.broadcast %146 : vector<8x1xf32> to vector<8x64xf32>
    %148 = arith.subf %144, %147 : vector<8x64xf32>
    %149 = math.exp %148 : vector<8x64xf32>
    %cst_50 = arith.constant dense<0.000000e+00> : vector<8xf32>
    %150 = vector.multi_reduction <add>, %149, %cst_50 [1] : vector<8x64xf32> to vector<8xf32>
    %151 = vector.shape_cast %150 : vector<8xf32> to vector<8x1xf32>
    %152 = tpu.reciprocal %151 {approx = true} : vector<8x1xf32> -> vector<8x1xf32>
    %153 = vector.broadcast %152 : vector<8x1xf32> to vector<8x64xf32>
    %154 = arith.mulf %149, %153 : vector<8x64xf32>
    %155 = arith.truncf %154 : vector<8x64xf32> to vector<8x64xbf16>
    %156 = vector.extract_strided_slice %15 {offsets = [0, 112], sizes = [64, 16], strides = [1, 1]} : vector<64x128xbf16> to vector<64x16xbf16>
    %cst_51 = arith.constant dense<0.000000e+00> : vector<8x16xf32>
    %157 = tpu.matmul %155, %156, %cst_51 {dimension_numbers = #tpu.dot_dimension_numbers<[1], [0], [0], [1], [0, 0, 1, 1], [], []>} : vector<8x64xbf16>, vector<64x16xbf16>, vector<8x16xf32> -> vector<8x16xf32>
    %158 = arith.truncf %157 : vector<8x16xf32> to vector<8x16xbf16>
    %c0_52 = arith.constant 0 : index
    %c112 = arith.constant 112 : index
    %159 = vector.load %arg14[%c0_52, %c112] : memref<8x128xbf16, #tpu.memory_space<vmem>>, vector<8x16xbf16>
    tpu.vector_store %arg14[%c0_52, %c112], %158 {strides = array<i32>} : memref<8x128xbf16, #tpu.memory_space<vmem>>, vector<8x16xbf16>,
    %c0_53 = arith.constant 0 : index
    %c0_54 = arith.constant 0 : index
    %160 = vector.load %arg14[%c0_53, %c0_54] : memref<8x128xbf16, #tpu.memory_space<vmem>>, vector<8x128xbf16>
    %c0_55 = arith.constant 0 : index
    %c0_56 = arith.constant 0 : index
    %161 = vector.load %arg9[%c0_55, %c0_56] : memref<128x256xbf16, #tpu.memory_space<vmem>>, vector<128x256xbf16>
    %cst_57 = arith.constant dense<0.000000e+00> : vector<8x256xf32>
    %162 = tpu.matmul %160, %161, %cst_57 {dimension_numbers = #tpu.dot_dimension_numbers<[1], [0], [0], [1], [0, 0, 1, 1], [], []>} : vector<8x128xbf16>, vector<128x256xbf16>, vector<8x256xf32> -> vector<8x256xf32>
    %c0_58 = arith.constant 0 : index
    %c0_59 = arith.constant 0 : index
    %163 = vector.load %arg10[%c0_58, %c0_59] : memref<1x256xf32, #tpu.memory_space<vmem>>, vector<1x256xf32>
    %164 = vector.broadcast %163 : vector<1x256xf32> to vector<8x256xf32>
    %165 = arith.addf %162, %164 : vector<8x256xf32>
    %c0_60 = arith.constant 0 : index
    %c0_61 = arith.constant 0 : index
    %c0_62 = arith.constant 0 : index
    %166 = vector.load %arg11[%c0_60, %c0_61, %c0_62] : memref<1x8x256xf32, #tpu.memory_space<vmem>>, vector<1x8x256xf32>
    %167 = vector.shape_cast %166 : vector<1x8x256xf32> to vector<8x256xf32>
    %168 = vector.shape_cast %165 : vector<8x256xf32> to vector<1x8x256xf32>
    tpu.vector_store %arg11[%c0_60, %c0_61, %c0_62], %168 {strides = array<i32>} : memref<1x8x256xf32, #tpu.memory_space<vmem>>, vector<1x8x256xf32>,
    return
  }
  func.func @transform_0(%arg0: i32, %arg1: i32) -> (i32, i32, i32) {
    %c0_i32 = arith.constant 0 : i32
    %c0_i32_0 = arith.constant 0 : i32
    return %arg0, %arg1, %c0_i32 : i32, i32, i32
  }
  func.func @transform_1(%arg0: i32, %arg1: i32) -> (i32, i32, i32) {
    %c0_i32 = arith.constant 0 : i32
    %c0_i32_0 = arith.constant 0 : i32
    %c0_i32_1 = arith.constant 0 : i32
    return %arg0, %c0_i32, %c0_i32_0 : i32, i32, i32
  }
  func.func @transform_2(%arg0: i32, %arg1: i32) -> (i32, i32) {
    %c0_i32 = arith.constant 0 : i32
    %c0_i32_0 = arith.constant 0 : i32
    %c0_i32_1 = arith.constant 0 : i32
    return %c0_i32, %c0_i32_0 : i32, i32
  }
  func.func @transform_3(%arg0: i32, %arg1: i32) -> (i32, i32) {
    %c0_i32 = arith.constant 0 : i32
    %c0_i32_0 = arith.constant 0 : i32
    %c0_i32_1 = arith.constant 0 : i32
    return %c0_i32, %c0_i32_0 : i32, i32
  }
  func.func @transform_4(%arg0: i32, %arg1: i32) -> (i32, i32) {
    %c0_i32 = arith.constant 0 : i32
    %c0_i32_0 = arith.constant 0 : i32
    %c0_i32_1 = arith.constant 0 : i32
    return %c0_i32, %c0_i32_0 : i32, i32
  }
  func.func @transform_5(%arg0: i32, %arg1: i32) -> (i32, i32) {
    %c0_i32 = arith.constant 0 : i32
    %c0_i32_0 = arith.constant 0 : i32
    %c0_i32_1 = arith.constant 0 : i32
    return %c0_i32, %c0_i32_0 : i32, i32
  }
  func.func @transform_6(%arg0: i32, %arg1: i32) -> (i32, i32) {
    %c0_i32 = arith.constant 0 : i32
    %c0_i32_0 = arith.constant 0 : i32
    %c0_i32_1 = arith.constant 0 : i32
    return %c0_i32, %c0_i32_0 : i32, i32
  }
  func.func @transform_7(%arg0: i32, %arg1: i32) -> (i32, i32) {
    %c0_i32 = arith.constant 0 : i32
    %c0_i32_0 = arith.constant 0 : i32
    %c0_i32_1 = arith.constant 0 : i32
    return %c0_i32, %c0_i32_0 : i32, i32
  }
  func.func @transform_8(%arg0: i32, %arg1: i32) -> (i32, i32) {
    %c0_i32 = arith.constant 0 : i32
    %c0_i32_0 = arith.constant 0 : i32
    %c0_i32_1 = arith.constant 0 : i32
    return %c0_i32, %c0_i32_0 : i32, i32
  }
  func.func @transform_9(%arg0: i32, %arg1: i32) -> (i32, i32, i32) {
    %c0_i32 = arith.constant 0 : i32
    %c0_i32_0 = arith.constant 0 : i32
    return %arg0, %arg1, %c0_i32 : i32, i32, i32
  }
}

</mosaic_0001>

<llo_original>
// kernel: tpu_custom_call.1
$region0: #{tpu_custom_call.1}
  #allocation0 [shape = 'u32[]', space=smem, size = 0x4, offset = 0x4, fixed_abs, tag = 'smem constant byte address 0x4 - core index']
  #allocation1 [shape = 'u32[144,128]{1,0:T(1,128)}', space=vmem, size = 0x12000, scoped, tag = 'internal scratch']
  #allocation2 [shape = 'bf16[64,128]{1,0:T(16,128)(2,1)}', space=vmem, size = 0x4000, scoped, tag = 'scratch operand']
  #allocation3 [shape = 'bf16[64,128]{1,0:T(16,128)(2,1)}', space=vmem, size = 0x4000, scoped, tag = 'scratch operand']
  #allocation4 [shape = 'bf16[8,128]{1,0:T(8,128)(2,1)}', space=vmem, size = 0x800, scoped, tag = 'scratch operand']
  %s0 = inlined_call_operand.hbm [shape: f32[2,8,256], index: 0, kind: input, shape index: {}]
  %s1 = inlined_call_operand.hbm [shape: f32[2,64,256], index: 1, kind: input, shape index: {}]
  %s2 = inlined_call_operand.hbm [shape: bf16[256,128], index: 2, kind: input, shape index: {}]
  %s3 = inlined_call_operand.vmem [shape: f32[1,128], index: 3, kind: input, shape index: {}]
  %s4 = inlined_call_operand.hbm [shape: bf16[256,256], index: 4, kind: input, shape index: {}]
  %s5 = inlined_call_operand.vmem [shape: f32[1,256], index: 5, kind: input, shape index: {}]
  %s6 = inlined_call_operand.hbm [shape: f32[64,128], index: 6, kind: input, shape index: {}]
  %s7 = inlined_call_operand.hbm [shape: bf16[128,256], index: 7, kind: input, shape index: {}]
  %s8 = inlined_call_operand.vmem [shape: f32[1,256], index: 8, kind: input, shape index: {}]
  %s9 = inlined_call_operand.hbm [shape: f32[2,8,256], index: 9, kind: output, shape index: {}]
  %s10 = sld [smem:[#allocation0]]
  $region97: #{tpu_custom_call.1} parent=0
    _
  %s12 = ssub.s32 1, %s10
  %s13 = scalar_select 0, %s12, %s10
  $region1: #{tpu_custom_call.1} parent=0
    #allocation5 [shape = 'u8[16384]{0}', space=vmem, size = 0x4000, scoped, tag = 'input window, operand 0']
    #allocation6 [shape = 's32[2]{0}', space=sflag, size = 0x8, scoped, tag = 'scoped memory for tpu_custom_call.1']
    #allocation7 [shape = 's32[2]{0}', space=sflag, size = 0x8, scoped, tag = 'scoped memory for tpu_custom_call.1']
    #allocation8 [shape = 'u8[131072]{0}', space=vmem, size = 0x20000, scoped, tag = 'input window, operand 1']
    #allocation9 [shape = 's32[2]{0}', space=sflag, size = 0x8, scoped, tag = 'scoped memory for tpu_custom_call.1']
    #allocation10 [shape = 'u8[65536]{0}', space=vmem, size = 0x10000, scoped, tag = 'input window, operand 2, single buffered']
    #allocation11 [shape = 'u8[131072]{0}', space=vmem, size = 0x20000, scoped, tag = 'input window, operand 4, single buffered']
    #allocation12 [shape = 's32[1]{0}', space=sflag, size = 0x4, scoped, tag = 'scoped memory for tpu_custom_call.1']
    #allocation13 [shape = 'u8[32768]{0}', space=vmem, size = 0x8000, scoped, tag = 'input window, operand 6, single buffered']
    #allocation14 [shape = 'u8[65536]{0}', space=vmem, size = 0x10000, scoped, tag = 'input window, operand 7, single buffered']
    #allocation15 [shape = 's32[1]{0}', space=sflag, size = 0x4, scoped, tag = 'scoped memory for tpu_custom_call.1']
    #allocation16 [shape = 'u8[16384]{0}', space=vmem, size = 0x4000, scoped, tag = 'output window, operand 0']
    %14 = vsyncpa [#allocation6], 0
    %s15 = scalar_lea.sflag [#allocation6], 1
    %16 = vsyncpa %s15, 0
    %17 = vsyncpa [#allocation9], 0
    %s18 = scalar_lea.sflag [#allocation9], 1
    %19 = vsyncpa %s18, 0
    %20 = vsyncpa [#allocation12], 0
    %21 = vsyncpa [#allocation15], 0
    %22 = vsyncpa [#allocation7], 0
    %s23 = scalar_lea.sflag [#allocation7], 1
    %24 = vsyncpa %s23, 0
    loop: start=0, step=1, limit=4
    $region2: #{tpu_custom_call.1} parent=1 // loop_pre_header
      _
    $region3: #{tpu_custom_call.1} parent=1 // loop_header
      %s26 = sphi 0, %s30
      %p27 = scmp.ge.s32.totalorder %s26, 4
      %s33 = sphi 0, %s45
      %s34 = sphi 0, %s41
      %s35 = sphi 0, %s33
      %s36 = sphi 0, %s34
      %s37 = sphi 0, %s35
      %s38 = sphi 0, %s36
      %s50 = sphi 0, %s52
      %s53 = sphi 0, %s50
      %s54 = sphi 0, %s53
      %s70 = sphi 0, %s54
      %s76 = sphi 0, %s78
      %s79 = sphi 0, %s76
      %s80 = sphi 0, %s79
      %s96 = sphi 0, %s80
      %s100 = sphi 0, %s100
      %s102 = sphi 0, %s100
      %s103 = sphi 0, %s102
      %s117 = sphi 0, %s103
      %s121 = sphi 0, %s121
      %s123 = sphi 0, %s121
      %s124 = sphi 0, %s123
      %s138 = sphi 0, %s124
      %s142 = sphi 0, %s142
      %s144 = sphi 0, %s142
      %s145 = sphi 0, %s144
      %s159 = sphi 0, %s145
      %s163 = sphi 0, %s163
      %s165 = sphi 0, %s163
      %s166 = sphi 0, %s165
      %s180 = sphi 0, %s166
      %s184 = sphi 0, %s184
      %s186 = sphi 0, %s184
      %s187 = sphi 0, %s186
      %s201 = sphi 0, %s187
      %s205 = sphi 0, %s205
      %s207 = sphi 0, %s205
      %s208 = sphi 0, %s207
      %s222 = sphi 0, %s208
      %s226 = sphi 0, %s226
      %s228 = sphi 0, %s226
      %s229 = sphi 0, %s228
      %s243 = sphi 0, %s229
      %s251 = sphi 0, %s253
      %s254 = sphi 0, %s251
      %s255 = sphi 0, %s254
      %s271 = sphi 0, %s255
    $region4: #{tpu_custom_call.1} parent=1 // loop_header_branch
      %29 = sbr.rel (%p27) target = $region8
    $region5: #{tpu_custom_call.1} parent=1 // loop_body
      %s31 = ssub.s32 %s26, 1
      %s32 = ssub.s32 %s26, 2
      %s39 = sadd.s32 1, %s34
      %p40 = scmp.ge.s32.totalorder %s39, 1
      %s41 = scalar_select %p40, 0, %s39
      %s42 = sadd.s32 1, %s33
      %s43 = scalar_select %p40, %s42, %s33
      %p44 = scmp.ge.s32.totalorder %s43, 2
      %s45 = scalar_select %p44, 0, %s43
      %s46 = ssub.s32 %s33, %s45
      %s47 = ssub.s32 %s34, %s41
      %s48 = sor.u32 %s46, %s47
      %p49 = scmp.eq.s32.totalorder %s48, 0
      %s51 = sadd.s32 %s50, 1
      %s52 = scalar_select %p49, %s50, %s51
      %p55 = pneg %p49
      %p56 = scmp.eq.s32.totalorder %s26, 1
      %p57 = por %p55, %p56
      %p58 = scmp.ne.s32.totalorder %s50, %s53
      %p59 = scmp.eq.s32.totalorder %s26, 0
      %p60 = por %p58, %p59
      %p61 = scmp.ne.s32.totalorder %s50, %s53
      %p62 = scmp.eq.s32.totalorder %s31, 1
      %p63 = por %p61, %p62
      %p64 = scmp.ne.s32.totalorder %s53, %s54
      %p65 = scmp.eq.s32.totalorder %s31, 0
      %p66 = por %p64, %p65
      %p67 = scmp.ne.s32.totalorder %s53, %s54
      %p68 = scmp.eq.s32.totalorder %s32, 1
      %p69 = por %p67, %p68
      %p71 = scmp.ne.s32.totalorder %s54, %s70
      %p72 = scmp.eq.s32.totalorder %s32, 0
      %p73 = por %p71, %p72
      %s74 = ssub.s32 %s33, %s45
      %p75 = scmp.eq.s32.totalorder %s74, 0
      %s77 = sadd.s32 %s76, 1
      %s78 = scalar_select %p75, %s76, %s77
      %p81 = pneg %p75
      %p82 = scmp.eq.s32.totalorder %s26, 1
      %p83 = por %p81, %p82
      %p84 = scmp.ne.s32.totalorder %s76, %s79
      %p85 = scmp.eq.s32.totalorder %s26, 0
      %p86 = por %p84, %p85
      %p87 = scmp.ne.s32.totalorder %s76, %s79
      %p88 = scmp.eq.s32.totalorder %s31, 1
      %p89 = por %p87, %p88
      %p90 = scmp.ne.s32.totalorder %s79, %s80
      %p91 = scmp.eq.s32.totalorder %s31, 0
      %p92 = por %p90, %p91
      %p93 = scmp.ne.s32.totalorder %s79, %s80
      %p94 = scmp.eq.s32.totalorder %s32, 1
      %p95 = por %p93, %p94
      %p97 = scmp.ne.s32.totalorder %s80, %s96
      %p98 = scmp.eq.s32.totalorder %s32, 0
      %p99 = por %p97, %p98
      %s101 = sadd.s32 %s100, 1
      %p104 = scmp.eq.s32.totalorder %s26, 1
      %p105 = scmp.ne.s32.totalorder %s100, %s102
      %p106 = scmp.eq.s32.totalorder %s26, 0
      %p107 = por %p105, %p106
      %p108 = scmp.ne.s32.totalorder %s100, %s102
      %p109 = scmp.eq.s32.totalorder %s31, 1
      %p110 = por %p108, %p109
      %p111 = scmp.ne.s32.totalorder %s102, %s103
      %p112 = scmp.eq.s32.totalorder %s31, 0
      %p113 = por %p111, %p112
      %p114 = scmp.ne.s32.totalorder %s102, %s103
      %p115 = scmp.eq.s32.totalorder %s32, 1
      %p116 = por %p114, %p115
      %p118 = scmp.ne.s32.totalorder %s103, %s117
      %p119 = scmp.eq.s32.totalorder %s32, 0
      %p120 = por %p118, %p119
      %s122 = sadd.s32 %s121, 1
      %p125 = scmp.eq.s32.totalorder %s26, 1
      %p126 = scmp.ne.s32.totalorder %s121, %s123
      %p127 = scmp.eq.s32.totalorder %s26, 0
      %p128 = por %p126, %p127
      %p129 = scmp.ne.s32.totalorder %s121, %s123
      %p130 = scmp.eq.s32.totalorder %s31, 1
      %p131 = por %p129, %p130
      %p132 = scmp.ne.s32.totalorder %s123, %s124
      %p133 = scmp.eq.s32.totalorder %s31, 0
      %p134 = por %p132, %p133
      %p135 = scmp.ne.s32.totalorder %s123, %s124
      %p136 = scmp.eq.s32.totalorder %s32, 1
      %p137 = por %p135, %p136
      %p139 = scmp.ne.s32.totalorder %s124, %s138
      %p140 = scmp.eq.s32.totalorder %s32, 0
      %p141 = por %p139, %p140
      %s143 = sadd.s32 %s142, 1
      %p146 = scmp.eq.s32.totalorder %s26, 1
      %p147 = scmp.ne.s32.totalorder %s142, %s144
      %p148 = scmp.eq.s32.totalorder %s26, 0
      %p149 = por %p147, %p148
      %p150 = scmp.ne.s32.totalorder %s142, %s144
      %p151 = scmp.eq.s32.totalorder %s31, 1
      %p152 = por %p150, %p151
      %p153 = scmp.ne.s32.totalorder %s144, %s145
      %p154 = scmp.eq.s32.totalorder %s31, 0
      %p155 = por %p153, %p154
      %p156 = scmp.ne.s32.totalorder %s144, %s145
      %p157 = scmp.eq.s32.totalorder %s32, 1
      %p158 = por %p156, %p157
      %p160 = scmp.ne.s32.totalorder %s145, %s159
      %p161 = scmp.eq.s32.totalorder %s32, 0
      %p162 = por %p160, %p161
      %s164 = sadd.s32 %s163, 1
      %p167 = scmp.eq.s32.totalorder %s26, 1
      %p168 = scmp.ne.s32.totalorder %s163, %s165
      %p169 = scmp.eq.s32.totalorder %s26, 0
      %p170 = por %p168, %p169
      %p171 = scmp.ne.s32.totalorder %s163, %s165
      %p172 = scmp.eq.s32.totalorder %s31, 1
      %p173 = por %p171, %p172
      %p174 = scmp.ne.s32.totalorder %s165, %s166
      %p175 = scmp.eq.s32.totalorder %s31, 0
      %p176 = por %p174, %p175
      %p177 = scmp.ne.s32.totalorder %s165, %s166
      %p178 = scmp.eq.s32.totalorder %s32, 1
      %p179 = por %p177, %p178
      %p181 = scmp.ne.s32.totalorder %s166, %s180
      %p182 = scmp.eq.s32.totalorder %s32, 0
      %p183 = por %p181, %p182
      %s185 = sadd.s32 %s184, 1
      %p188 = scmp.eq.s32.totalorder %s26, 1
      %p189 = scmp.ne.s32.totalorder %s184, %s186
      %p190 = scmp.eq.s32.totalorder %s26, 0
      %p191 = por %p189, %p190
      %p192 = scmp.ne.s32.totalorder %s184, %s186
      %p193 = scmp.eq.s32.totalorder %s31, 1
      %p194 = por %p192, %p193
      %p195 = scmp.ne.s32.totalorder %s186, %s187
      %p196 = scmp.eq.s32.totalorder %s31, 0
      %p197 = por %p195, %p196
      %p198 = scmp.ne.s32.totalorder %s186, %s187
      %p199 = scmp.eq.s32.totalorder %s32, 1
      %p200 = por %p198, %p199
      %p202 = scmp.ne.s32.totalorder %s187, %s201
      %p203 = scmp.eq.s32.totalorder %s32, 0
      %p204 = por %p202, %p203
      %s206 = sadd.s32 %s205, 1
      %p209 = scmp.eq.s32.totalorder %s26, 1
      %p210 = scmp.ne.s32.totalorder %s205, %s207
      %p211 = scmp.eq.s32.totalorder %s26, 0
      %p212 = por %p210, %p211
      %p213 = scmp.ne.s32.totalorder %s205, %s207
      %p214 = scmp.eq.s32.totalorder %s31, 1
      %p215 = por %p213, %p214
      %p216 = scmp.ne.s32.totalorder %s207, %s208
      %p217 = scmp.eq.s32.totalorder %s31, 0
      %p218 = por %p216, %p217
      %p219 = scmp.ne.s32.totalorder %s207, %s208
      %p220 = scmp.eq.s32.totalorder %s32, 1
      %p221 = por %p219, %p220
      %p223 = scmp.ne.s32.totalorder %s208, %s222
      %p224 = scmp.eq.s32.totalorder %s32, 0
      %p225 = por %p223, %p224
      %s227 = sadd.s32 %s226, 1
      %p230 = scmp.eq.s32.totalorder %s26, 1
      %p231 = scmp.ne.s32.totalorder %s226, %s228
      %p232 = scmp.eq.s32.totalorder %s26, 0
      %p233 = por %p231, %p232
      %p234 = scmp.ne.s32.totalorder %s226, %s228
      %p235 = scmp.eq.s32.totalorder %s31, 1
      %p236 = por %p234, %p235
      %p237 = scmp.ne.s32.totalorder %s228, %s229
      %p238 = scmp.eq.s32.totalorder %s31, 0
      %p239 = por %p237, %p238
      %p240 = scmp.ne.s32.totalorder %s228, %s229
      %p241 = scmp.eq.s32.totalorder %s32, 1
      %p242 = por %p240, %p241
      %p244 = scmp.ne.s32.totalorder %s229, %s243
      %p245 = scmp.eq.s32.totalorder %s32, 0
      %p246 = por %p244, %p245
      %s247 = ssub.s32 %s33, %s45
      %s248 = ssub.s32 %s34, %s41
      %s249 = sor.u32 %s247, %s248
      %p250 = scmp.eq.s32.totalorder %s249, 0
      %s252 = sadd.s32 %s251, 1
      %s253 = scalar_select %p250, %s251, %s252
      %p256 = pneg %p250
      %p257 = scmp.eq.s32.totalorder %s26, 1
      %p258 = por %p256, %p257
      %p259 = scmp.ne.s32.totalorder %s251, %s254
      %p260 = scmp.eq.s32.totalorder %s26, 0
      %p261 = por %p259, %p260
      %p262 = scmp.ne.s32.totalorder %s251, %s254
      %p263 = scmp.eq.s32.totalorder %s31, 1
      %p264 = por %p262, %p263
      %p265 = scmp.ne.s32.totalorder %s254, %s255
      %p266 = scmp.eq.s32.totalorder %s31, 0
      %p267 = por %p265, %p266
      %p268 = scmp.ne.s32.totalorder %s254, %s255
      %p269 = scmp.eq.s32.totalorder %s32, 1
      %p270 = por %p268, %p269
      %p272 = scmp.ne.s32.totalorder %s255, %s271
      %p273 = scmp.eq.s32.totalorder %s32, 0
      %p274 = por %p272, %p273
      %p275 = scmp.le.s32.totalorder 1, %s26
      %p276 = scmp.lt.s32.totalorder %s26, 3
      %p277 = pnand %p275, %p276
      %p278 = pneg %p277
      // Predicated region
      $region9: #{tpu_custom_call.1} parent=5 // pred_check
        _
      $region10: #{tpu_custom_call.1} parent=5 // pred_check_branch
        %280 = sbr.rel (%p277) target = $region12
      $region11: #{tpu_custom_call.1} parent=5 // pred_region
        %s281 = ssub.s32 %s26, 1
        // Predicated region
        $region13: #{tpu_custom_call.1} parent=11 // pred_check
          %p282 = pneg %p113
        $region14: #{tpu_custom_call.1} parent=11 // pred_check_branch
          %284 = sbr.rel (%p282) target = $region16
        $region15: #{tpu_custom_call.1} parent=11 // pred_region
          %s286 = ssub.s32 2048, 2048
          %287 = vsyncadd [#allocation9], %s286
          %s288 = sshll.u32 [#allocation10], 4
          %s289 = int_to_ptr.vmem [resolvable:$true] %s288
          %294 = dma.hbm_to_vmem [thread:$0]  %s2, 2048, %s289, [#allocation9], 64, 64, 4
        $region16: #{tpu_custom_call.1} parent=11 // pred_fallthru
          _
        // Predicated region
        $region17: #{tpu_custom_call.1} parent=11 // pred_check
          %p295 = pneg %p134
        $region18: #{tpu_custom_call.1} parent=11 // pred_check_branch
          %297 = sbr.rel (%p295) target = $region20
        $region19: #{tpu_custom_call.1} parent=11 // pred_region
          _
        $region20: #{tpu_custom_call.1} parent=11 // pred_fallthru
          _
        // Predicated region
        $region21: #{tpu_custom_call.1} parent=11 // pred_check
          %p298 = pneg %p155
        $region22: #{tpu_custom_call.1} parent=11 // pred_check_branch
          %300 = sbr.rel (%p298) target = $region24
        $region23: #{tpu_custom_call.1} parent=11 // pred_region
          %s302 = ssub.s32 4096, 4096
          %303 = vsyncadd [#allocation12], %s302
          %s304 = sshll.u32 [#allocation11], 4
          %s305 = int_to_ptr.vmem [resolvable:$true] %s304
          %310 = dma.hbm_to_vmem [thread:$0]  %s4, 4096, %s305, [#allocation12], 128, 128, 8
        $region24: #{tpu_custom_call.1} parent=11 // pred_fallthru
          _
        // Predicated region
        $region25: #{tpu_custom_call.1} parent=11 // pred_check
          %p311 = pneg %p176
        $region26: #{tpu_custom_call.1} parent=11 // pred_check_branch
          %313 = sbr.rel (%p311) target = $region28
        $region27: #{tpu_custom_call.1} parent=11 // pred_region
          _
        $region28: #{tpu_custom_call.1} parent=11 // pred_fallthru
          _
        // Predicated region
        $region29: #{tpu_custom_call.1} parent=11 // pred_check
          %p314 = pneg %p197
        $region30: #{tpu_custom_call.1} parent=11 // pred_check_branch
          %316 = sbr.rel (%p314) target = $region32
        $region31: #{tpu_custom_call.1} parent=11 // pred_region
          %s318 = ssub.s32 1024, 1024
          %319 = vsyncadd [#allocation12], %s318
          %s320 = sshll.u32 [#allocation13], 4
          %s321 = int_to_ptr.vmem [resolvable:$true] %s320
          %326 = dma.hbm_to_vmem [thread:$0]  %s6, 1024, %s321, [#allocation12], 128, 128, 8
        $region32: #{tpu_custom_call.1} parent=11 // pred_fallthru
          _
        // Predicated region
        $region33: #{tpu_custom_call.1} parent=11 // pred_check
          %p327 = pneg %p218
        $region34: #{tpu_custom_call.1} parent=11 // pred_check_branch
          %329 = sbr.rel (%p327) target = $region36
        $region35: #{tpu_custom_call.1} parent=11 // pred_region
          %s331 = ssub.s32 2048, 2048
          %332 = vsyncadd [#allocation15], %s331
          %s333 = sshll.u32 [#allocation14], 4
          %s334 = int_to_ptr.vmem [resolvable:$true] %s333
          %339 = dma.hbm_to_vmem [thread:$0]  %s7, 2048, %s334, [#allocation15], 128, 128, 8
        $region36: #{tpu_custom_call.1} parent=11 // pred_fallthru
          _
        // Predicated region
        $region37: #{tpu_custom_call.1} parent=11 // pred_check
          %p340 = pneg %p239
        $region38: #{tpu_custom_call.1} parent=11 // pred_check_branch
          %342 = sbr.rel (%p340) target = $region40
        $region39: #{tpu_custom_call.1} parent=11 // pred_region
          _
        $region40: #{tpu_custom_call.1} parent=11 // pred_fallthru
          _
      $region12: #{tpu_custom_call.1} parent=5 // pred_fallthru
        _
      %p343 = scmp.lt.s32.totalorder %s26, 2
      // Predicated region
      $region41: #{tpu_custom_call.1} parent=5 // pred_check
        %p344 = pneg %p343
      $region42: #{tpu_custom_call.1} parent=5 // pred_check_branch
        %346 = sbr.rel (%p344) target = $region44
      $region43: #{tpu_custom_call.1} parent=5 // pred_region
        // Predicated region
        $region45: #{tpu_custom_call.1} parent=43 // pred_check
          %p347 = pneg %p60
        $region46: #{tpu_custom_call.1} parent=43 // pred_check_branch
          %349 = sbr.rel (%p347) target = $region48
        $region47: #{tpu_custom_call.1} parent=43 // pred_region
          %s350 = sand.u32 %s50, 1
          %s351 = scalar_lea.sflag [#allocation6], %s350
          %s352 = sand.u32 %s50, 1
          %s353 = smul.addr %s352, 16
          %s354 = scalar_lea.vmem [#allocation5], %s353
          %s356 = ssub.s32 256, 256
          %357 = vsyncadd %s351, %s356
          %s358 = smul.addr %s34, 2
          %s359 = smul.addr %s33, 2
          %s360 = sadd.s32 %s358, %s359
          %s361 = smul.addr %s360, 128
          %s362 = scalar_lea.hbm %s0, %s361
          %s364 = sshll.u32 %s354, 4
          %s365 = int_to_ptr.vmem [resolvable:$true] %s364
          %367 = dma.hbm_to_vmem [thread:$0]  %s362, 256, %s365, %s351
        $region48: #{tpu_custom_call.1} parent=43 // pred_fallthru
          _
        // Predicated region
        $region49: #{tpu_custom_call.1} parent=43 // pred_check
          %p368 = pneg %p86
        $region50: #{tpu_custom_call.1} parent=43 // pred_check_branch
          %370 = sbr.rel (%p368) target = $region52
        $region51: #{tpu_custom_call.1} parent=43 // pred_region
          %s371 = sand.u32 %s26, 1
          %s372 = scalar_lea.sflag [#allocation9], %s371
          %s373 = sand.u32 %s76, 1
          %s374 = smul.addr %s373, 128
          %s375 = scalar_lea.vmem [#allocation8], %s374
          %s377 = ssub.s32 2048, 2048
          %378 = vsyncadd %s372, %s377
          %s379 = smul.addr %s33, 16
          %s380 = smul.addr %s379, 128
          %s381 = scalar_lea.hbm %s1, %s380
          %s382 = sshll.u32 %s375, 4
          %s383 = int_to_ptr.vmem [resolvable:$true] %s382
          %388 = dma.hbm_to_vmem [thread:$0]  %s381, 2048, %s383, %s372, 256, 256, 16
        $region52: #{tpu_custom_call.1} parent=43 // pred_fallthru
          _
      $region44: #{tpu_custom_call.1} parent=5 // pred_fallthru
        _
      %p389 = scmp.le.s32.totalorder 1, %s26
      %p390 = scmp.lt.s32.totalorder %s26, 3
      %p391 = pnand %p389, %p390
      %p392 = pneg %p391
      // Predicated region
      $region53: #{tpu_custom_call.1} parent=5 // pred_check
        _
      $region54: #{tpu_custom_call.1} parent=5 // pred_check_branch
        %394 = sbr.rel (%p391) target = $region56
      $region55: #{tpu_custom_call.1} parent=5 // pred_region
        %s395 = ssub.s32 %s26, 1
        %s396 = sand.u32 %s53, 1
        %s397 = scalar_lea.sflag [#allocation6], %s396
        %s398 = sand.u32 %s53, 1
        %s399 = smul.addr %s398, 16
        %s400 = scalar_lea.vmem [#allocation5], %s399
        // Predicated region
        $region57: #{tpu_custom_call.1} parent=55 // pred_check
          %p401 = pneg %p66
        $region58: #{tpu_custom_call.1} parent=55 // pred_check_branch
          %403 = sbr.rel (%p401) target = $region60
        $region59: #{tpu_custom_call.1} parent=55 // pred_region
          %404 = dma.done %s397, 256
        $region60: #{tpu_custom_call.1} parent=55 // pred_fallthru
          _
        %s405 = sand.u32 %s31, 1
        %s406 = scalar_lea.sflag [#allocation9], %s405
        %s407 = sand.u32 %s79, 1
        %s408 = smul.addr %s407, 128
        %s409 = scalar_lea.vmem [#allocation8], %s408
        // Predicated region
        $region61: #{tpu_custom_call.1} parent=55 // pred_check
          %p410 = pneg %p92
        $region62: #{tpu_custom_call.1} parent=55 // pred_check_branch
          %412 = sbr.rel (%p410) target = $region64
        $region63: #{tpu_custom_call.1} parent=55 // pred_region
          %413 = dma.done %s406, 2048
        $region64: #{tpu_custom_call.1} parent=55 // pred_fallthru
          _
        // Predicated region
        $region65: #{tpu_custom_call.1} parent=55 // pred_check
          %p414 = pneg %p113
        $region66: #{tpu_custom_call.1} parent=55 // pred_check_branch
          %416 = sbr.rel (%p414) target = $region68
        $region67: #{tpu_custom_call.1} parent=55 // pred_region
          %417 = dma.done [#allocation9], 2048
        $region68: #{tpu_custom_call.1} parent=55 // pred_fallthru
          _
        // Predicated region
        $region69: #{tpu_custom_call.1} parent=55 // pred_check
          %p418 = pneg %p155
        $region70: #{tpu_custom_call.1} parent=55 // pred_check_branch
          %420 = sbr.rel (%p418) target = $region72
        $region71: #{tpu_custom_call.1} parent=55 // pred_region
          %421 = dma.done [#allocation12], 4096
        $region72: #{tpu_custom_call.1} parent=55 // pred_fallthru
          _
        // Predicated region
        $region73: #{tpu_custom_call.1} parent=55 // pred_check
          %p422 = pneg %p197
        $region74: #{tpu_custom_call.1} parent=55 // pred_check_branch
          %424 = sbr.rel (%p422) target = $region76
        $region75: #{tpu_custom_call.1} parent=55 // pred_region
          %425 = dma.done [#allocation12], 1024
        $region76: #{tpu_custom_call.1} parent=55 // pred_fallthru
          _
        // Predicated region
        $region77: #{tpu_custom_call.1} parent=55 // pred_check
          %p426 = pneg %p218
        $region78: #{tpu_custom_call.1} parent=55 // pred_check_branch
          %428 = sbr.rel (%p426) target = $region80
        $region79: #{tpu_custom_call.1} parent=55 // pred_region
          %429 = dma.done [#allocation15], 2048
        $region80: #{tpu_custom_call.1} parent=55 // pred_fallthru
          _
        %s430 = sand.u32 %s53, 1
        %s431 = scalar_lea.sflag [#allocation6], %s430
        %s432 = sand.u32 %s53, 1
        %s433 = smul.addr %s432, 16
        %s434 = scalar_lea.vmem [#allocation5], %s433
        %p435 = pneg %p66
        %p436 = pneg %p63
        %s437 = sand.u32 %s31, 1
        %s438 = scalar_lea.sflag [#allocation9], %s437
        %s439 = sand.u32 %s79, 1
        %s440 = smul.addr %s439, 128
        %s441 = scalar_lea.vmem [#allocation8], %s440
        %p442 = pneg %p92
        %p443 = pneg %p89
        %p444 = pneg %p113
        %p445 = pneg %p110
        %p446 = pneg %p134
        %p447 = pneg %p131
        %p448 = pneg %p155
        %p449 = pneg %p152
        %p450 = pneg %p176
        %p451 = pneg %p173
        %p452 = pneg %p197
        %p453 = pneg %p194
        %p454 = pneg %p218
        %p455 = pneg %p215
        %p456 = pneg %p239
        %p457 = pneg %p236
        %p458 = pneg %p267
        %p459 = pneg %p264
        %s460 = sand.u32 %s254, 1
        %s461 = scalar_lea.sflag [#allocation7], %s460
        %s462 = sand.u32 %s254, 1
        %s463 = smul.addr %s462, 16
        %s464 = scalar_lea.vmem [#allocation16], %s463
        %p466 = scmp.eq.s32.totalorder %s36, 0
        // Predicated region
        $region81: #{tpu_custom_call.1} parent=55 // pred_check
          %p467 = pneg %p466
        $region82: #{tpu_custom_call.1} parent=55 // pred_check_branch
          %469 = sbr.rel (%p467) target = $region84
        $region83: #{tpu_custom_call.1} parent=55 // pred_region
          %v470 = vld [vmem:[%s409] sm:$0xff]
          %v471 = vld [vmem:[%s409 + $0x8] sm:$0xff]
          %v472 = vld [vmem:[%s409 + $0x10] sm:$0xff]
          %v473 = vld [vmem:[%s409 + $0x18] sm:$0xff]
          %v474 = vld [vmem:[%s409 + $0x20] sm:$0xff]
          %v475 = vld [vmem:[%s409 + $0x28] sm:$0xff]
          %v476 = vld [vmem:[%s409 + $0x30] sm:$0xff]
          %v477 = vld [vmem:[%s409 + $0x38] sm:$0xff]
          %v478 = vld [vmem:[%s409 + $0x40] sm:$0xff]
          %v479 = vld [vmem:[%s409 + $0x48] sm:$0xff]
          %v480 = vld [vmem:[%s409 + $0x50] sm:$0xff]
          %v481 = vld [vmem:[%s409 + $0x58] sm:$0xff]
          %v482 = vld [vmem:[%s409 + $0x60] sm:$0xff]
          %v483 = vld [vmem:[%s409 + $0x68] sm:$0xff]
          %v484 = vld [vmem:[%s409 + $0x70] sm:$0xff]
          %v485 = vld [vmem:[%s409 + $0x78] sm:$0xff]
          %v486 = vpack.c.bf16 %v472, %v470
          %v487 = vpack.c.bf16 %v473, %v471
          %v488 = vpack.c.bf16 %v476, %v474
          %v489 = vpack.c.bf16 %v477, %v475
          %v490 = vpack.c.bf16 %v480, %v478
          %v491 = vpack.c.bf16 %v481, %v479
          %v492 = vpack.c.bf16 %v484, %v482
          %v493 = vpack.c.bf16 %v485, %v483
          %v494 = vld [vmem:[#allocation11] sm:$0xff]
          %v495 = vld [vmem:[#allocation11 + $0x8] sm:$0xff]
          %v496 = vld [vmem:[#allocation11 + $0x10] sm:$0xff]
          %v497 = vld [vmem:[#allocation11 + $0x18] sm:$0xff]
          %v498 = vld [vmem:[#allocation11 + $0x20] sm:$0xff]
          %v499 = vld [vmem:[#allocation11 + $0x28] sm:$0xff]
          %v500 = vld [vmem:[#allocation11 + $0x30] sm:$0xff]
          %v501 = vld [vmem:[#allocation11 + $0x38] sm:$0xff]
          %v502 = vld [vmem:[#allocation11 + $0x40] sm:$0xff]
          %v503 = vld [vmem:[#allocation11 + $0x48] sm:$0xff]
          %v504 = vld [vmem:[#allocation11 + $0x50] sm:$0xff]
          %v505 = vld [vmem:[#allocation11 + $0x58] sm:$0xff]
          %v506 = vld [vmem:[#allocation11 + $0x60] sm:$0xff]
          %v507 = vld [vmem:[#allocation11 + $0x68] sm:$0xff]
          %v508 = vld [vmem:[#allocation11 + $0x70] sm:$0xff]
          %v509 = vld [vmem:[#allocation11 + $0x78] sm:$0xff]
          %v510 = vld [vmem:[#allocation11 + $0x80] sm:$0xff]
          %v511 = vld [vmem:[#allocation11 + $0x88] sm:$0xff]
          %v512 = vld [vmem:[#allocation11 + $0x90] sm:$0xff]
          %v513 = vld [vmem:[#allocation11 + $0x98] sm:$0xff]
          %v514 = vld [vmem:[#allocation11 + $0xa0] sm:$0xff]
          %v515 = vld [vmem:[#allocation11 + $0xa8] sm:$0xff]
          %v516 = vld [vmem:[#allocation11 + $0xb0] sm:$0xff]
          %v517 = vld [vmem:[#allocation11 + $0xb8] sm:$0xff]
          %v518 = vld [vmem:[#allocation11 + $0xc0] sm:$0xff]
          %v519 = vld [vmem:[#allocation11 + $0xc8] sm:$0xff]
          %v520 = vld [vmem:[#allocation11 + $0xd0] sm:$0xff]
          %v521 = vld [vmem:[#allocation11 + $0xd8] sm:$0xff]
          %v522 = vld [vmem:[#allocation11 + $0xe0] sm:$0xff]
          %v523 = vld [vmem:[#allocation11 + $0xe8] sm:$0xff]
          %v524 = vld [vmem:[#allocation11 + $0xf0] sm:$0xff]
          %v525 = vld [vmem:[#allocation11 + $0xf8] sm:$0xff]
          %v526 = vld [vmem:[%s5] sm:$0x3]
          %v528 = vlaneseq
          %v529 = vshrl.u32 %v528, 7
          %v530 = vsub.s32 0, %v529
          %v531 = vrot.slane %v526, %v530
          %v532 = vlaneseq
          %v533 = vshrl.u32 %v532, 7
          %v534 = vsub.s32 1, %v533
          %v535 = vrot.slane %v526, %v534
          %v570 = vunpack.c.l.b16 %v494
          %v571 = vunpack.c.h.b16 %v494
          %v572 = vunpack.c.l.b16 %v495
          %v573 = vunpack.c.h.b16 %v495
          %v574 = vunpack.c.l.b16 %v496
          %v575 = vunpack.c.h.b16 %v496
          %v576 = vunpack.c.l.b16 %v497
          %v577 = vunpack.c.h.b16 %v497
          %v578 = vunpack.c.l.b16 %v498
          %v579 = vunpack.c.h.b16 %v498
          %v580 = vunpack.c.l.b16 %v499
          %v581 = vunpack.c.h.b16 %v499
          %v582 = vunpack.c.l.b16 %v500
          %v583 = vunpack.c.h.b16 %v500
          %v584 = vunpack.c.l.b16 %v501
          %v585 = vunpack.c.h.b16 %v501
          %v586 = vunpack.c.l.b16 %v502
          %v587 = vunpack.c.h.b16 %v502
          %v588 = vunpack.c.l.b16 %v503
          %v589 = vunpack.c.h.b16 %v503
          %v590 = vunpack.c.l.b16 %v504
          %v591 = vunpack.c.h.b16 %v504
          %v592 = vunpack.c.l.b16 %v505
          %v593 = vunpack.c.h.b16 %v505
          %v594 = vunpack.c.l.b16 %v506
          %v595 = vunpack.c.h.b16 %v506
          %v596 = vunpack.c.l.b16 %v507
          %v597 = vunpack.c.h.b16 %v507
          %v598 = vunpack.c.l.b16 %v508
          %v599 = vunpack.c.h.b16 %v508
          %v600 = vunpack.c.l.b16 %v509
          %v601 = vunpack.c.h.b16 %v509
          %v602 = vunpack.c.l.b16 %v510
          %v603 = vunpack.c.h.b16 %v510
          %v604 = vunpack.c.l.b16 %v511
          %v605 = vunpack.c.h.b16 %v511
          %v606 = vunpack.c.l.b16 %v512
          %v607 = vunpack.c.h.b16 %v512
          %v608 = vunpack.c.l.b16 %v513
          %v609 = vunpack.c.h.b16 %v513
          %v610 = vunpack.c.l.b16 %v514
          %v611 = vunpack.c.h.b16 %v514
          %v612 = vunpack.c.l.b16 %v515
          %v613 = vunpack.c.h.b16 %v515
          %v614 = vunpack.c.l.b16 %v516
          %v615 = vunpack.c.h.b16 %v516
          %v616 = vunpack.c.l.b16 %v517
          %v617 = vunpack.c.h.b16 %v517
          %v618 = vunpack.c.l.b16 %v518
          %v619 = vunpack.c.h.b16 %v518
          %v620 = vunpack.c.l.b16 %v519
          %v621 = vunpack.c.h.b16 %v519
          %v622 = vunpack.c.l.b16 %v520
          %v623 = vunpack.c.h.b16 %v520
          %v624 = vunpack.c.l.b16 %v521
          %v625 = vunpack.c.h.b16 %v521
          %v626 = vunpack.c.l.b16 %v522
          %v627 = vunpack.c.h.b16 %v522
          %v628 = vunpack.c.l.b16 %v523
          %v629 = vunpack.c.h.b16 %v523
          %v630 = vunpack.c.l.b16 %v524
          %v631 = vunpack.c.h.b16 %v524
          %v632 = vunpack.c.l.b16 %v525
          %v633 = vunpack.c.h.b16 %v525
          %v634 = vpack.c.b16 %v572, %v570
          %v635 = vpack.c.b16 %v573, %v571
          %v636 = vpack.c.b16 %v576, %v574
          %v637 = vpack.c.b16 %v577, %v575
          %v638 = vpack.c.b16 %v580, %v578
          %v639 = vpack.c.b16 %v581, %v579
          %v640 = vpack.c.b16 %v584, %v582
          %v641 = vpack.c.b16 %v585, %v583
          %v642 = vpack.c.b16 %v588, %v586
          %v643 = vpack.c.b16 %v589, %v587
          %v644 = vpack.c.b16 %v592, %v590
          %v645 = vpack.c.b16 %v593, %v591
          %v646 = vpack.c.b16 %v596, %v594
          %v647 = vpack.c.b16 %v597, %v595
          %v648 = vpack.c.b16 %v600, %v598
          %v649 = vpack.c.b16 %v601, %v599
          %v650 = vpack.c.b16 %v604, %v602
          %v651 = vpack.c.b16 %v605, %v603
          %v652 = vpack.c.b16 %v608, %v606
          %v653 = vpack.c.b16 %v609, %v607
          %v654 = vpack.c.b16 %v612, %v610
          %v655 = vpack.c.b16 %v613, %v611
          %v656 = vpack.c.b16 %v616, %v614
          %v657 = vpack.c.b16 %v617, %v615
          %v658 = vpack.c.b16 %v620, %v618
          %v659 = vpack.c.b16 %v621, %v619
          %v660 = vpack.c.b16 %v624, %v622
          %v661 = vpack.c.b16 %v625, %v623
          %v662 = vpack.c.b16 %v628, %v626
          %v663 = vpack.c.b16 %v629, %v627
          %v664 = vpack.c.b16 %v632, %v630
          %v665 = vpack.c.b16 %v633, %v631
          %698 = vmatprep.subr.bf16.mxu0 %v635
          %699 = vmatpush1.bf16.msra.mxu0 %v634
          %700 = vmatprep.subr.bf16.mxu0 %v637
          %701 = vmatpush1.bf16.msra.mxu0 %v636
          %702 = vmatprep.subr.bf16.mxu0 %v639
          %703 = vmatpush1.bf16.msra.mxu0 %v638
          %704 = vmatprep.subr.bf16.mxu0 %v641
          %705 = vmatpush1.bf16.msra.mxu0 %v640
          %706 = vmatprep.subr.bf16.mxu0 %v643
          %707 = vmatpush1.bf16.msra.mxu0 %v642
          %708 = vmatprep.subr.bf16.mxu0 %v645
          %709 = vmatpush1.bf16.msra.mxu0 %v644
          %710 = vmatprep.subr.bf16.mxu0 %v647
          %711 = vmatpush1.bf16.msra.mxu0 %v646
          %712 = vmatprep.subr.bf16.mxu0 %v649
          %713 = vmatpush1.bf16.msra.mxu0 %v648
          %714 = vmatprep.subr.bf16.mxu0 %v651
          %715 = vmatpush1.bf16.msra.mxu0 %v650
          %716 = vmatprep.subr.bf16.mxu0 %v653
          %717 = vmatpush1.bf16.msra.mxu0 %v652
          %718 = vmatprep.subr.bf16.mxu0 %v655
          %719 = vmatpush1.bf16.msra.mxu0 %v654
          %720 = vmatprep.subr.bf16.mxu0 %v657
          %721 = vmatpush1.bf16.msra.mxu0 %v656
          %722 = vmatprep.subr.bf16.mxu0 %v659
          %723 = vmatpush1.bf16.msra.mxu0 %v658
          %724 = vmatprep.subr.bf16.mxu0 %v661
          %725 = vmatpush1.bf16.msra.mxu0 %v660
          %726 = vmatprep.subr.bf16.mxu0 %v663
          %727 = vmatpush1.bf16.msra.mxu0 %v662
          %728 = vmatprep.subr.bf16.mxu0 %v665
          %729 = vmatpush1.bf16.msra.mxu0 %v664
          %730 = vmatprep.mubr.bf16.mxu0 %v487
          %731 = vmatmul.mubr.bf16.gmra.mrb[0].mxu0 %v486
          %v732 = vpop.f32.mrb[0].mxu0
          %v733 = vadd.f32 %v531, %v732
          %v734 = vpop.f32.mrb[0].mxu0
          %v735 = vadd.f32 %v535, %v734
          %v736 = vpop.f32.mrb[0].mxu0
          %v737 = vadd.f32 %v531, %v736
          %v738 = vpop.f32.mrb[0].mxu0
          %v739 = vadd.f32 %v535, %v738
          %740 = vmatprep.mubr.bf16.mxu0 %v489
          %741 = vmatmul.mubr.bf16.gmra.mrb[0].mxu0 %v488
          %v742 = vpop.f32.mrb[0].mxu0
          %v743 = vadd.f32 %v531, %v742
          %v744 = vpop.f32.mrb[0].mxu0
          %v745 = vadd.f32 %v535, %v744
          %v746 = vpop.f32.mrb[0].mxu0
          %v747 = vadd.f32 %v531, %v746
          %v748 = vpop.f32.mrb[0].mxu0
          %v749 = vadd.f32 %v535, %v748
          %750 = vmatprep.mubr.bf16.mxu0 %v491
          %751 = vmatmul.mubr.bf16.gmra.mrb[0].mxu0 %v490
          %v752 = vpop.f32.mrb[0].mxu0
          %v753 = vadd.f32 %v531, %v752
          %v754 = vpop.f32.mrb[0].mxu0
          %v755 = vadd.f32 %v535, %v754
          %v756 = vpop.f32.mrb[0].mxu0
          %v757 = vadd.f32 %v531, %v756
          %v758 = vpop.f32.mrb[0].mxu0
          %v759 = vadd.f32 %v535, %v758
          %760 = vmatprep.mubr.bf16.mxu0 %v493
          %761 = vmatmul.mubr.bf16.gmra.mrb[0].mxu0 %v492
          %v762 = vpop.f32.mrb[0].mxu0
          %v763 = vadd.f32 %v531, %v762
          %v764 = vpop.f32.mrb[0].mxu0
          %v765 = vadd.f32 %v535, %v764
          %v766 = vpop.f32.mrb[0].mxu0
          %v767 = vadd.f32 %v531, %v766
          %v768 = vpop.f32.mrb[0].mxu0
          %v769 = vadd.f32 %v535, %v768
          %770 = vdwg.mxu0
          %v771 = vld [vmem:[#allocation13] sm:$0xff]
          %v772 = vld [vmem:[#allocation13 + $0x8] sm:$0xff]
          %v773 = vld [vmem:[#allocation13 + $0x10] sm:$0xff]
          %v774 = vld [vmem:[#allocation13 + $0x18] sm:$0xff]
          %v775 = vld [vmem:[#allocation13 + $0x20] sm:$0xff]
          %v776 = vld [vmem:[#allocation13 + $0x28] sm:$0xff]
          %v777 = vld [vmem:[#allocation13 + $0x30] sm:$0xff]
          %v778 = vld [vmem:[#allocation13 + $0x38] sm:$0xff]
          %v779 = vadd.f32 %v733, %v771
          %v780 = vadd.f32 %v737, %v772
          %v781 = vadd.f32 %v743, %v773
          %v782 = vadd.f32 %v747, %v774
          %v783 = vadd.f32 %v753, %v775
          %v784 = vadd.f32 %v757, %v776
          %v785 = vadd.f32 %v763, %v777
          %v786 = vadd.f32 %v767, %v778
          %v787 = vpack.c.bf16 %v780, %v779
          %v788 = vpack.c.bf16 %v782, %v781
          %v789 = vpack.c.bf16 %v784, %v783
          %v790 = vpack.c.bf16 %v786, %v785
          %791 = vst [vmem:[#allocation2] sm:$0xff] %v787
          %792 = vst [vmem:[#allocation2 + $0x8] sm:$0xff] %v788
          %793 = vst [vmem:[#allocation2 + $0x10] sm:$0xff] %v789
          %794 = vst [vmem:[#allocation2 + $0x18] sm:$0xff] %v790
          %v795 = vpack.c.bf16 %v739, %v735
          %v796 = vpack.c.bf16 %v749, %v745
          %v797 = vpack.c.bf16 %v759, %v755
          %v798 = vpack.c.bf16 %v769, %v765
          %799 = vst [vmem:[#allocation3] sm:$0xff] %v795
          %800 = vst [vmem:[#allocation3 + $0x8] sm:$0xff] %v796
          %801 = vst [vmem:[#allocation3 + $0x10] sm:$0xff] %v797
          %802 = vst [vmem:[#allocation3 + $0x18] sm:$0xff] %v798
        $region84: #{tpu_custom_call.1} parent=55 // pred_fallthru
          _
        %v803 = vld [vmem:[%s400] sm:$0xff]
        %v804 = vld [vmem:[%s400 + $0x8] sm:$0xff]
        %v805 = vpack.c.bf16 %v803, %v803
        %v806 = vpack.c.bf16 %v804, %v804
        %v807 = vld [vmem:[#allocation10] sm:$0xf]
        %v808 = vld [vmem:[#allocation10 + $0x4] sm:$0xf]
        %v809 = vld [vmem:[#allocation10 + $0x8] sm:$0xf]
        %v810 = vld [vmem:[#allocation10 + $0xc] sm:$0xf]
        %v811 = vld [vmem:[#allocation10 + $0x10] sm:$0xf]
        %v812 = vld [vmem:[#allocation10 + $0x14] sm:$0xf]
        %v813 = vld [vmem:[#allocation10 + $0x18] sm:$0xf]
        %v814 = vld [vmem:[#allocation10 + $0x1c] sm:$0xf]
        %v815 = vld [vmem:[#allocation10 + $0x20] sm:$0xf]
        %v816 = vld [vmem:[#allocation10 + $0x24] sm:$0xf]
        %v817 = vld [vmem:[#allocation10 + $0x28] sm:$0xf]
        %v818 = vld [vmem:[#allocation10 + $0x2c] sm:$0xf]
        %v819 = vld [vmem:[#allocation10 + $0x30] sm:$0xf]
        %v820 = vld [vmem:[#allocation10 + $0x34] sm:$0xf]
        %v821 = vld [vmem:[#allocation10 + $0x38] sm:$0xf]
        %v822 = vld [vmem:[#allocation10 + $0x3c] sm:$0xf]
        %v823 = vld [vmem:[#allocation10 + $0x40] sm:$0xf]
        %v824 = vld [vmem:[#allocation10 + $0x44] sm:$0xf]
        %v825 = vld [vmem:[#allocation10 + $0x48] sm:$0xf]
        %v826 = vld [vmem:[#allocation10 + $0x4c] sm:$0xf]
        %v827 = vld [vmem:[#allocation10 + $0x50] sm:$0xf]
        %v828 = vld [vmem:[#allocation10 + $0x54] sm:$0xf]
        %v829 = vld [vmem:[#allocation10 + $0x58] sm:$0xf]
        %v830 = vld [vmem:[#allocation10 + $0x5c] sm:$0xf]
        %v831 = vld [vmem:[#allocation10 + $0x60] sm:$0xf]
        %v832 = vld [vmem:[#allocation10 + $0x64] sm:$0xf]
        %v833 = vld [vmem:[#allocation10 + $0x68] sm:$0xf]
        %v834 = vld [vmem:[#allocation10 + $0x6c] sm:$0xf]
        %v835 = vld [vmem:[#allocation10 + $0x70] sm:$0xf]
        %v836 = vld [vmem:[#allocation10 + $0x74] sm:$0xf]
        %v837 = vld [vmem:[#allocation10 + $0x78] sm:$0xf]
        %v838 = vld [vmem:[#allocation10 + $0x7c] sm:$0xf]
        %v839 = vld [vmem:[%s3] sm:$0x1]
        %v841 = vlaneseq
        %v842 = vshrl.u32 %v841, 7
        %v843 = vsub.s32 0, %v842
        %v844 = vrot.slane %v839, %v843
        %v878 = vunpack.c.l.b16 %v807
        %v879 = vunpack.c.l.b16 %v808
        %v880 = vunpack.c.l.b16 %v809
        %v881 = vunpack.c.l.b16 %v810
        %v882 = vunpack.c.l.b16 %v811
        %v883 = vunpack.c.l.b16 %v812
        %v884 = vunpack.c.l.b16 %v813
        %v885 = vunpack.c.l.b16 %v814
        %v886 = vunpack.c.l.b16 %v815
        %v887 = vunpack.c.l.b16 %v816
        %v888 = vunpack.c.l.b16 %v817
        %v889 = vunpack.c.l.b16 %v818
        %v890 = vunpack.c.l.b16 %v819
        %v891 = vunpack.c.l.b16 %v820
        %v892 = vunpack.c.l.b16 %v821
        %v893 = vunpack.c.l.b16 %v822
        %v894 = vunpack.c.l.b16 %v823
        %v895 = vunpack.c.l.b16 %v824
        %v896 = vunpack.c.l.b16 %v825
        %v897 = vunpack.c.l.b16 %v826
        %v898 = vunpack.c.l.b16 %v827
        %v899 = vunpack.c.l.b16 %v828
        %v900 = vunpack.c.l.b16 %v829
        %v901 = vunpack.c.l.b16 %v830
        %v902 = vunpack.c.l.b16 %v831
        %v903 = vunpack.c.l.b16 %v832
        %v904 = vunpack.c.l.b16 %v833
        %v905 = vunpack.c.l.b16 %v834
        %v906 = vunpack.c.l.b16 %v835
        %v907 = vunpack.c.l.b16 %v836
        %v908 = vunpack.c.l.b16 %v837
        %v909 = vunpack.c.l.b16 %v838
        %v910 = vpack.c.b16 %v879, %v878
        %v911 = vpack.c.b16 %v881, %v880
        %v912 = vpack.c.b16 %v883, %v882
        %v913 = vpack.c.b16 %v885, %v884
        %v914 = vpack.c.b16 %v887, %v886
        %v915 = vpack.c.b16 %v889, %v888
        %v916 = vpack.c.b16 %v891, %v890
        %v917 = vpack.c.b16 %v893, %v892
        %v918 = vpack.c.b16 %v895, %v894
        %v919 = vpack.c.b16 %v897, %v896
        %v920 = vpack.c.b16 %v899, %v898
        %v921 = vpack.c.b16 %v901, %v900
        %v922 = vpack.c.b16 %v903, %v902
        %v923 = vpack.c.b16 %v905, %v904
        %v924 = vpack.c.b16 %v907, %v906
        %v925 = vpack.c.b16 %v909, %v908
        %942 = vmatprep.subr.bf16.mxu0 0
        %943 = vmatpush1.bf16.msra.mxu0 %v910
        %944 = vmatprep.subr.bf16.mxu0 0
        %945 = vmatpush1.bf16.msra.mxu0 %v911
        %946 = vmatprep.subr.bf16.mxu0 0
        %947 = vmatpush1.bf16.msra.mxu0 %v912
        %948 = vmatprep.subr.bf16.mxu0 0
        %949 = vmatpush1.bf16.msra.mxu0 %v913
        %950 = vmatprep.subr.bf16.mxu0 0
        %951 = vmatpush1.bf16.msra.mxu0 %v914
        %952 = vmatprep.subr.bf16.mxu0 0
        %953 = vmatpush1.bf16.msra.mxu0 %v915
        %954 = vmatprep.subr.bf16.mxu0 0
        %955 = vmatpush1.bf16.msra.mxu0 %v916
        %956 = vmatprep.subr.bf16.mxu0 0
        %957 = vmatpush1.bf16.msra.mxu0 %v917
        %958 = vmatprep.subr.bf16.mxu0 0
        %959 = vmatpush1.bf16.msra.mxu0 %v918
        %960 = vmatprep.subr.bf16.mxu0 0
        %961 = vmatpush1.bf16.msra.mxu0 %v919
        %962 = vmatprep.subr.bf16.mxu0 0
        %963 = vmatpush1.bf16.msra.mxu0 %v920
        %964 = vmatprep.subr.bf16.mxu0 0
        %965 = vmatpush1.bf16.msra.mxu0 %v921
        %966 = vmatprep.subr.bf16.mxu0 0
        %967 = vmatpush1.bf16.msra.mxu0 %v922
        %968 = vmatprep.subr.bf16.mxu0 0
        %969 = vmatpush1.bf16.msra.mxu0 %v923
        %970 = vmatprep.subr.bf16.mxu0 0
        %971 = vmatpush1.bf16.msra.mxu0 %v924
        %972 = vmatprep.subr.bf16.mxu0 0
        %973 = vmatpush1.bf16.msra.mxu0 %v925
        %974 = vmatprep.mubr.bf16.mxu0 %v806
        %975 = vmatmul.mubr.bf16.gmra.mrb[0].mxu0 %v805
        %v976 = vpop.f32.mrb[0].mxu0
        %v977 = vadd.f32 %v844, %v976
        %v978 = vpop.f32.mrb[0].mxu0
        %v979 = vpop.f32.mrb[0].mxu0
        %v980 = vpop.f32.mrb[0].mxu0
        %981 = vdwg.mxu0
        %v982 = vmul.f32 %v977, 0.25
        %v983 = vpack.c.bf16 %v982, %v982
        %v984 = vld [vmem:[#allocation2] sm:$0xff]
        %v985 = vld [vmem:[#allocation2 + $0x8] sm:$0xff]
        %v986 = vld [vmem:[#allocation2 + $0x10] sm:$0xff]
        %v987 = vld [vmem:[#allocation2 + $0x18] sm:$0xff]
        %v988 = vld [vmem:[#allocation3] sm:$0xff]
        %v989 = vld [vmem:[#allocation3 + $0x8] sm:$0xff]
        %v990 = vld [vmem:[#allocation3 + $0x10] sm:$0xff]
        %v991 = vld [vmem:[#allocation3 + $0x18] sm:$0xff]
        %vm992 = vcmask 130048
        %v994 = vsel %vm992, %v983, 0
        %v997 = vsel %vm992, %v984, 0
        %v1000 = vsel %vm992, %v985, 0
        %v1003 = vsel %vm992, %v986, 0
        %v1006 = vsel %vm992, %v987, 0
        %1008 = vmatprep.subr.bf16.mxu0 0
        %1009 = vmatpush1.bf16.xpose.msra.mxu0 %v997
        %1010 = vmatprep.subr.bf16.mxu0 0
        %1011 = vmatpush1.bf16.xpose.msra.mxu0 %v1000
        %1012 = vmatprep.subr.bf16.mxu0 0
        %1013 = vmatpush1.bf16.xpose.msra.mxu0 %v1003
        %1014 = vmatprep.subr.bf16.mxu0 0
        %1015 = vmatpush1.bf16.xpose.msra.mxu0 %v1006
        %1016 = vmatprep.subr.bf16.mxu0 0
        %1017 = vmatpush1.bf16.xpose.msra.mxu0 0
        %1018 = vmatprep.subr.bf16.mxu0 0
        %1019 = vmatpush1.bf16.xpose.msra.mxu0 0
        %1020 = vmatprep.subr.bf16.mxu0 0
        %1021 = vmatpush1.bf16.xpose.msra.mxu0 0
        %1022 = vmatprep.subr.bf16.mxu0 0
        %1023 = vmatpush1.bf16.xpose.msra.mxu0 0
        %1024 = vmatprep.subr.bf16.mxu0 0
        %1025 = vmatpush1.bf16.xpose.msra.mxu0 0
        %1026 = vmatprep.subr.bf16.mxu0 0
        %1027 = vmatpush1.bf16.xpose.msra.mxu0 0
        %1028 = vmatprep.subr.bf16.mxu0 0
        %1029 = vmatpush1.bf16.xpose.msra.mxu0 0
        %1030 = vmatprep.subr.bf16.mxu0 0
        %1031 = vmatpush1.bf16.xpose.msra.mxu0 0
        %1032 = vmatprep.subr.bf16.mxu0 0
        %1033 = vmatpush1.bf16.xpose.msra.mxu0 0
        %1034 = vmatprep.subr.bf16.mxu0 0
        %1035 = vmatpush1.bf16.xpose.msra.mxu0 0
        %1036 = vmatprep.subr.bf16.mxu0 0
        %1037 = vmatpush1.bf16.xpose.msra.mxu0 0
        %1038 = vmatprep.subr.bf16.mxu0 0
        %1039 = vmatpush1.bf16.xpose.msra.mxu0 0
        %1040 = vmatprep.mubr.bf16.mxu0 0
        %1041 = vmatmul.mubr.bf16.gmra.mrb[0].mxu0 %v994
        %v1042 = vpop.f32.mrb[0].mxu0
        %v1043 = vadd.f32 0.0, %v1042
        %v1044 = vpop.f32.mrb[0].mxu0
        %v1045 = vpop.f32.mrb[0].mxu0
        %v1046 = vpop.f32.mrb[0].mxu0
        %1047 = vdwg.mxu0
        %vm1048 = vcmask 523264
        %v1049 = vsel %vm1048, %v1043, -inf
        %1050 = vmax.xlane.f32.xlu0 %v1049
        %v1051 = vpop.xlane.xlu0 %1050
        %v1052 = vsub.f32 %v1043, %v1051
        %v1053 = vmul.f32 %v1052, 1.442695
        %v1054 = vpow.pop %v1053
        %v1055 = vsel %vm1048, %v1054, 0.0
        %1056 = vadd.xlane.f32.xlu0 %v1055
        %v1057 = vpop.xlane.xlu0 %1056
        %v1058 = vrcp.pop %v1057
        %v1059 = vmul.f32 %v1054, %v1058
        %v1060 = vpack.c.bf16 %v1059, %v1059
        %v1062 = vsel %vm1048, %v1060, 0
        %1064 = vmatprep.subr.bf16.mxu0 0
        %1065 = vmatpush1.bf16.msra.mxu0 %v988
        %1066 = vmatprep.subr.bf16.mxu0 0
        %1067 = vmatpush1.bf16.msra.mxu0 %v989
        %1068 = vmatprep.subr.bf16.mxu0 0
        %1069 = vmatpush1.bf16.msra.mxu0 %v990
        %1070 = vmatprep.subr.bf16.mxu0 0
        %1071 = vmatpush1.bf16.msra.mxu0 %v991
        %1072 = vmatprep.subr.bf16.mxu0 0
        %1073 = vmatpush1.bf16.msra.mxu0 0
        %1074 = vmatprep.subr.bf16.mxu0 0
        %1075 = vmatpush1.bf16.msra.mxu0 0
        %1076 = vmatprep.subr.bf16.mxu0 0
        %1077 = vmatpush1.bf16.msra.mxu0 0
        %1078 = vmatprep.subr.bf16.mxu0 0
        %1079 = vmatpush1.bf16.msra.mxu0 0
        %1080 = vmatprep.subr.bf16.mxu0 0
        %1081 = vmatpush1.bf16.msra.mxu0 0
        %1082 = vmatprep.subr.bf16.mxu0 0
        %1083 = vmatpush1.bf16.msra.mxu0 0
        %1084 = vmatprep.subr.bf16.mxu0 0
        %1085 = vmatpush1.bf16.msra.mxu0 0
        %1086 = vmatprep.subr.bf16.mxu0 0
        %1087 = vmatpush1.bf16.msra.mxu0 0
        %1088 = vmatprep.subr.bf16.mxu0 0
        %1089 = vmatpush1.bf16.msra.mxu0 0
        %1090 = vmatprep.subr.bf16.mxu0 0
        %1091 = vmatpush1.bf16.msra.mxu0 0
        %1092 = vmatprep.subr.bf16.mxu0 0
        %1093 = vmatpush1.bf16.msra.mxu0 0
        %1094 = vmatprep.subr.bf16.mxu0 0
        %1095 = vmatpush1.bf16.msra.mxu0 0
        %1096 = vmatprep.mubr.bf16.mxu0 0
        %1097 = vmatmul.mubr.bf16.gmra.mrb[0].mxu0 %v1062
        %v1098 = vpop.f32.mrb[0].mxu0
        %v1099 = vadd.f32 0.0, %v1098
        %v1100 = vpop.f32.mrb[0].mxu0
        %v1101 = vpop.f32.mrb[0].mxu0
        %v1102 = vpop.f32.mrb[0].mxu0
        %1103 = vdwg.mxu0
        %v1104 = vpack.c.bf16 %v1099, %v1099
        %vm1105 = vcmask 125952
        %1106 = vst.msk [vmem:[#allocation4] sm:$0xf] %vm1105, %v1104
        %1108 = vrot.lane.b32.xlu0 %v983, 112
        %v1109 = vpop.permute.xlu0 %1108
        %1114 = vrot.lane.b32.xlu0 %v984, 112
        %v1115 = vpop.permute.xlu0 %1114
        %1116 = vrot.lane.b32.xlu0 %v985, 112
        %v1117 = vpop.permute.xlu0 %1116
        %1118 = vrot.lane.b32.xlu0 %v986, 112
        %v1119 = vpop.permute.xlu0 %1118
        %1120 = vrot.lane.b32.xlu0 %v987, 112
        %v1121 = vpop.permute.xlu0 %1120
        %v1123 = vsel %vm992, %v1109, 0
        %v1126 = vsel %vm992, %v1115, 0
        %v1129 = vsel %vm992, %v1117, 0
        %v1132 = vsel %vm992, %v1119, 0
        %v1135 = vsel %vm992, %v1121, 0
        %1137 = vmatprep.subr.bf16.mxu0 0
        %1138 = vmatpush1.bf16.xpose.msra.mxu0 %v1126
        %1139 = vmatprep.subr.bf16.mxu0 0
        %1140 = vmatpush1.bf16.xpose.msra.mxu0 %v1129
        %1141 = vmatprep.subr.bf16.mxu0 0
        %1142 = vmatpush1.bf16.xpose.msra.mxu0 %v1132
        %1143 = vmatprep.subr.bf16.mxu0 0
        %1144 = vmatpush1.bf16.xpose.msra.mxu0 %v1135
        %1145 = vmatprep.subr.bf16.mxu0 0
        %1146 = vmatpush1.bf16.xpose.msra.mxu0 0
        %1147 = vmatprep.subr.bf16.mxu0 0
        %1148 = vmatpush1.bf16.xpose.msra.mxu0 0
        %1149 = vmatprep.subr.bf16.mxu0 0
        %1150 = vmatpush1.bf16.xpose.msra.mxu0 0
        %1151 = vmatprep.subr.bf16.mxu0 0
        %1152 = vmatpush1.bf16.xpose.msra.mxu0 0
        %1153 = vmatprep.subr.bf16.mxu0 0
        %1154 = vmatpush1.bf16.xpose.msra.mxu0 0
        %1155 = vmatprep.subr.bf16.mxu0 0
        %1156 = vmatpush1.bf16.xpose.msra.mxu0 0
        %1157 = vmatprep.subr.bf16.mxu0 0
        %1158 = vmatpush1.bf16.xpose.msra.mxu0 0
        %1159 = vmatprep.subr.bf16.mxu0 0
        %1160 = vmatpush1.bf16.xpose.msra.mxu0 0
        %1161 = vmatprep.subr.bf16.mxu0 0
        %1162 = vmatpush1.bf16.xpose.msra.mxu0 0
        %1163 = vmatprep.subr.bf16.mxu0 0
        %1164 = vmatpush1.bf16.xpose.msra.mxu0 0
        %1165 = vmatprep.subr.bf16.mxu0 0
        %1166 = vmatpush1.bf16.xpose.msra.mxu0 0
        %1167 = vmatprep.subr.bf16.mxu0 0
        %1168 = vmatpush1.bf16.xpose.msra.mxu0 0
        %1169 = vmatprep.mubr.bf16.mxu0 0
        %1170 = vmatmul.mubr.bf16.gmra.mrb[0].mxu0 %v1123
        %v1171 = vpop.f32.mrb[0].mxu0
        %v1172 = vadd.f32 0.0, %v1171
        %v1173 = vpop.f32.mrb[0].mxu0
        %v1174 = vpop.f32.mrb[0].mxu0
        %v1175 = vpop.f32.mrb[0].mxu0
        %1176 = vdwg.mxu0
        %v1177 = vsel %vm1048, %v1172, -inf
        %1178 = vmax.xlane.f32.xlu0 %v1177
        %v1179 = vpop.xlane.xlu0 %1178
        %v1180 = vsub.f32 %v1172, %v1179
        %v1181 = vmul.f32 %v1180, 1.442695
        %v1182 = vpow.pop %v1181
        %v1183 = vsel %vm1048, %v1182, 0.0
        %1184 = vadd.xlane.f32.xlu0 %v1183
        %v1185 = vpop.xlane.xlu0 %1184
        %v1186 = vrcp.pop %v1185
        %v1187 = vmul.f32 %v1182, %v1186
        %v1188 = vpack.c.bf16 %v1187, %v1187
        %1193 = vrot.lane.b32.xlu0 %v988, 112
        %v1194 = vpop.permute.xlu0 %1193
        %1195 = vrot.lane.b32.xlu0 %v989, 112
        %v1196 = vpop.permute.xlu0 %1195
        %1197 = vrot.lane.b32.xlu0 %v990, 112
        %v1198 = vpop.permute.xlu0 %1197
        %1199 = vrot.lane.b32.xlu0 %v991, 112
        %v1200 = vpop.permute.xlu0 %1199
        %v1206 = vsel %vm1048, %v1188, 0
        %1208 = vmatprep.subr.bf16.mxu0 0
        %1209 = vmatpush1.bf16.msra.mxu0 %v1194
        %1210 = vmatprep.subr.bf16.mxu0 0
        %1211 = vmatpush1.bf16.msra.mxu0 %v1196
        %1212 = vmatprep.subr.bf16.mxu0 0
        %1213 = vmatpush1.bf16.msra.mxu0 %v1198
        %1214 = vmatprep.subr.bf16.mxu0 0
        %1215 = vmatpush1.bf16.msra.mxu0 %v1200
        %1216 = vmatprep.subr.bf16.mxu0 0
        %1217 = vmatpush1.bf16.msra.mxu0 0
        %1218 = vmatprep.subr.bf16.mxu0 0
        %1219 = vmatpush1.bf16.msra.mxu0 0
        %1220 = vmatprep.subr.bf16.mxu0 0
        %1221 = vmatpush1.bf16.msra.mxu0 0
        %1222 = vmatprep.subr.bf16.mxu0 0
        %1223 = vmatpush1.bf16.msra.mxu0 0
        %1224 = vmatprep.subr.bf16.mxu0 0
        %1225 = vmatpush1.bf16.msra.mxu0 0
        %1226 = vmatprep.subr.bf16.mxu0 0
        %1227 = vmatpush1.bf16.msra.mxu0 0
        %1228 = vmatprep.subr.bf16.mxu0 0
        %1229 = vmatpush1.bf16.msra.mxu0 0
        %1230 = vmatprep.subr.bf16.mxu0 0
        %1231 = vmatpush1.bf16.msra.mxu0 0
        %1232 = vmatprep.subr.bf16.mxu0 0
        %1233 = vmatpush1.bf16.msra.mxu0 0
        %1234 = vmatprep.subr.bf16.mxu0 0
        %1235 = vmatpush1.bf16.msra.mxu0 0
        %1236 = vmatprep.subr.bf16.mxu0 0
        %1237 = vmatpush1.bf16.msra.mxu0 0
        %1238 = vmatprep.subr.bf16.mxu0 0
        %1239 = vmatpush1.bf16.msra.mxu0 0
        %1240 = vmatprep.mubr.bf16.mxu0 0
        %1241 = vmatmul.mubr.bf16.gmra.mrb[0].mxu0 %v1206
        %v1242 = vpop.f32.mrb[0].mxu0
        %v1243 = vadd.f32 0.0, %v1242
        %v1244 = vpop.f32.mrb[0].mxu0
        %v1245 = vpop.f32.mrb[0].mxu0
        %v1246 = vpop.f32.mrb[0].mxu0
        %1247 = vdwg.mxu0
        %v1248 = vpack.c.bf16 %v1243, %v1243
        %v1250 = vunpack.c.l.b16 %v1248
        %v1251 = vpack.c.b16 %v1250, %v1250
        %1252 = vrot.lane.b32.xlu0 %v1251, 16
        %v1253 = vpop.permute.xlu0 %1252
        %vm1255 = vcmask 257152
        %1256 = vst.msk [vmem:[#allocation4] sm:$0xf] %vm1255, %v1253
        %1257 = vrot.lane.b32.xlu0 %v983, 96
        %v1258 = vpop.permute.xlu0 %1257
        %1259 = vrot.lane.b32.xlu0 %v984, 96
        %v1260 = vpop.permute.xlu0 %1259
        %1261 = vrot.lane.b32.xlu0 %v985, 96
        %v1262 = vpop.permute.xlu0 %1261
        %1263 = vrot.lane.b32.xlu0 %v986, 96
        %v1264 = vpop.permute.xlu0 %1263
        %1265 = vrot.lane.b32.xlu0 %v987, 96
        %v1266 = vpop.permute.xlu0 %1265
        %v1268 = vsel %vm992, %v1258, 0
        %v1271 = vsel %vm992, %v1260, 0
        %v1274 = vsel %vm992, %v1262, 0
        %v1277 = vsel %vm992, %v1264, 0
        %v1280 = vsel %vm992, %v1266, 0
        %1282 = vmatprep.subr.bf16.mxu0 0
        %1283 = vmatpush1.bf16.xpose.msra.mxu0 %v1271
        %1284 = vmatprep.subr.bf16.mxu0 0
        %1285 = vmatpush1.bf16.xpose.msra.mxu0 %v1274
        %1286 = vmatprep.subr.bf16.mxu0 0
        %1287 = vmatpush1.bf16.xpose.msra.mxu0 %v1277
        %1288 = vmatprep.subr.bf16.mxu0 0
        %1289 = vmatpush1.bf16.xpose.msra.mxu0 %v1280
        %1290 = vmatprep.subr.bf16.mxu0 0
        %1291 = vmatpush1.bf16.xpose.msra.mxu0 0
        %1292 = vmatprep.subr.bf16.mxu0 0
        %1293 = vmatpush1.bf16.xpose.msra.mxu0 0
        %1294 = vmatprep.subr.bf16.mxu0 0
        %1295 = vmatpush1.bf16.xpose.msra.mxu0 0
        %1296 = vmatprep.subr.bf16.mxu0 0
        %1297 = vmatpush1.bf16.xpose.msra.mxu0 0
        %1298 = vmatprep.subr.bf16.mxu0 0
        %1299 = vmatpush1.bf16.xpose.msra.mxu0 0
        %1300 = vmatprep.subr.bf16.mxu0 0
        %1301 = vmatpush1.bf16.xpose.msra.mxu0 0
        %1302 = vmatprep.subr.bf16.mxu0 0
        %1303 = vmatpush1.bf16.xpose.msra.mxu0 0
        %1304 = vmatprep.subr.bf16.mxu0 0
        %1305 = vmatpush1.bf16.xpose.msra.mxu0 0
        %1306 = vmatprep.subr.bf16.mxu0 0
        %1307 = vmatpush1.bf16.xpose.msra.mxu0 0
        %1308 = vmatprep.subr.bf16.mxu0 0
        %1309 = vmatpush1.bf16.xpose.msra.mxu0 0
        %1310 = vmatprep.subr.bf16.mxu0 0
        %1311 = vmatpush1.bf16.xpose.msra.mxu0 0
        %1312 = vmatprep.subr.bf16.mxu0 0
        %1313 = vmatpush1.bf16.xpose.msra.mxu0 0
        %1314 = vmatprep.mubr.bf16.mxu0 0
        %1315 = vmatmul.mubr.bf16.gmra.mrb[0].mxu0 %v1268
        %v1316 = vpop.f32.mrb[0].mxu0
        %v1317 = vadd.f32 0.0, %v1316
        %v1318 = vpop.f32.mrb[0].mxu0
        %v1319 = vpop.f32.mrb[0].mxu0
        %v1320 = vpop.f32.mrb[0].mxu0
        %1321 = vdwg.mxu0
        %v1322 = vsel %vm1048, %v1317, -inf
        %1323 = vmax.xlane.f32.xlu0 %v1322
        %v1324 = vpop.xlane.xlu0 %1323
        %v1325 = vsub.f32 %v1317, %v1324
        %v1326 = vmul.f32 %v1325, 1.442695
        %v1327 = vpow.pop %v1326
        %v1328 = vsel %vm1048, %v1327, 0.0
        %1329 = vadd.xlane.f32.xlu0 %v1328
        %v1330 = vpop.xlane.xlu0 %1329
        %v1331 = vrcp.pop %v1330
        %v1332 = vmul.f32 %v1327, %v1331
        %v1333 = vpack.c.bf16 %v1332, %v1332
        %1334 = vrot.lane.b32.xlu0 %v988, 96
        %v1335 = vpop.permute.xlu0 %1334
        %1336 = vrot.lane.b32.xlu0 %v989, 96
        %v1337 = vpop.permute.xlu0 %1336
        %1338 = vrot.lane.b32.xlu0 %v990, 96
        %v1339 = vpop.permute.xlu0 %1338
        %1340 = vrot.lane.b32.xlu0 %v991, 96
        %v1341 = vpop.permute.xlu0 %1340
        %v1347 = vsel %vm1048, %v1333, 0
        %1349 = vmatprep.subr.bf16.mxu0 0
        %1350 = vmatpush1.bf16.msra.mxu0 %v1335
        %1351 = vmatprep.subr.bf16.mxu0 0
        %1352 = vmatpush1.bf16.msra.mxu0 %v1337
        %1353 = vmatprep.subr.bf16.mxu0 0
        %1354 = vmatpush1.bf16.msra.mxu0 %v1339
        %1355 = vmatprep.subr.bf16.mxu0 0
        %1356 = vmatpush1.bf16.msra.mxu0 %v1341
        %1357 = vmatprep.subr.bf16.mxu0 0
        %1358 = vmatpush1.bf16.msra.mxu0 0
        %1359 = vmatprep.subr.bf16.mxu0 0
        %1360 = vmatpush1.bf16.msra.mxu0 0
        %1361 = vmatprep.subr.bf16.mxu0 0
        %1362 = vmatpush1.bf16.msra.mxu0 0
        %1363 = vmatprep.subr.bf16.mxu0 0
        %1364 = vmatpush1.bf16.msra.mxu0 0
        %1365 = vmatprep.subr.bf16.mxu0 0
        %1366 = vmatpush1.bf16.msra.mxu0 0
        %1367 = vmatprep.subr.bf16.mxu0 0
        %1368 = vmatpush1.bf16.msra.mxu0 0
        %1369 = vmatprep.subr.bf16.mxu0 0
        %1370 = vmatpush1.bf16.msra.mxu0 0
        %1371 = vmatprep.subr.bf16.mxu0 0
        %1372 = vmatpush1.bf16.msra.mxu0 0
        %1373 = vmatprep.subr.bf16.mxu0 0
        %1374 = vmatpush1.bf16.msra.mxu0 0
        %1375 = vmatprep.subr.bf16.mxu0 0
        %1376 = vmatpush1.bf16.msra.mxu0 0
        %1377 = vmatprep.subr.bf16.mxu0 0
        %1378 = vmatpush1.bf16.msra.mxu0 0
        %1379 = vmatprep.subr.bf16.mxu0 0
        %1380 = vmatpush1.bf16.msra.mxu0 0
        %1381 = vmatprep.mubr.bf16.mxu0 0
        %1382 = vmatmul.mubr.bf16.gmra.mrb[0].mxu0 %v1347
        %v1383 = vpop.f32.mrb[0].mxu0
        %v1384 = vadd.f32 0.0, %v1383
        %v1385 = vpop.f32.mrb[0].mxu0
        %v1386 = vpop.f32.mrb[0].mxu0
        %v1387 = vpop.f32.mrb[0].mxu0
        %1388 = vdwg.mxu0
        %v1389 = vpack.c.bf16 %v1384, %v1384
        %v1391 = vunpack.c.l.b16 %v1389
        %v1392 = vpack.c.b16 %v1391, %v1391
        %1393 = vrot.lane.b32.xlu0 %v1392, 32
        %v1394 = vpop.permute.xlu0 %1393
        %vm1396 = vcmask 388352
        %1397 = vst.msk [vmem:[#allocation4] sm:$0xf] %vm1396, %v1394
        %1398 = vrot.lane.b32.xlu0 %v983, 80
        %v1399 = vpop.permute.xlu0 %1398
        %1400 = vrot.lane.b32.xlu0 %v984, 80
        %v1401 = vpop.permute.xlu0 %1400
        %1402 = vrot.lane.b32.xlu0 %v985, 80
        %v1403 = vpop.permute.xlu0 %1402
        %1404 = vrot.lane.b32.xlu0 %v986, 80
        %v1405 = vpop.permute.xlu0 %1404
        %1406 = vrot.lane.b32.xlu0 %v987, 80
        %v1407 = vpop.permute.xlu0 %1406
        %v1409 = vsel %vm992, %v1399, 0
        %v1412 = vsel %vm992, %v1401, 0
        %v1415 = vsel %vm992, %v1403, 0
        %v1418 = vsel %vm992, %v1405, 0
        %v1421 = vsel %vm992, %v1407, 0
        %1423 = vmatprep.subr.bf16.mxu0 0
        %1424 = vmatpush1.bf16.xpose.msra.mxu0 %v1412
        %1425 = vmatprep.subr.bf16.mxu0 0
        %1426 = vmatpush1.bf16.xpose.msra.mxu0 %v1415
        %1427 = vmatprep.subr.bf16.mxu0 0
        %1428 = vmatpush1.bf16.xpose.msra.mxu0 %v1418
        %1429 = vmatprep.subr.bf16.mxu0 0
        %1430 = vmatpush1.bf16.xpose.msra.mxu0 %v1421
        %1431 = vmatprep.subr.bf16.mxu0 0
        %1432 = vmatpush1.bf16.xpose.msra.mxu0 0
        %1433 = vmatprep.subr.bf16.mxu0 0
        %1434 = vmatpush1.bf16.xpose.msra.mxu0 0
        %1435 = vmatprep.subr.bf16.mxu0 0
        %1436 = vmatpush1.bf16.xpose.msra.mxu0 0
        %1437 = vmatprep.subr.bf16.mxu0 0
        %1438 = vmatpush1.bf16.xpose.msra.mxu0 0
        %1439 = vmatprep.subr.bf16.mxu0 0
        %1440 = vmatpush1.bf16.xpose.msra.mxu0 0
        %1441 = vmatprep.subr.bf16.mxu0 0
        %1442 = vmatpush1.bf16.xpose.msra.mxu0 0
        %1443 = vmatprep.subr.bf16.mxu0 0
        %1444 = vmatpush1.bf16.xpose.msra.mxu0 0
        %1445 = vmatprep.subr.bf16.mxu0 0
        %1446 = vmatpush1.bf16.xpose.msra.mxu0 0
        %1447 = vmatprep.subr.bf16.mxu0 0
        %1448 = vmatpush1.bf16.xpose.msra.mxu0 0
        %1449 = vmatprep.subr.bf16.mxu0 0
        %1450 = vmatpush1.bf16.xpose.msra.mxu0 0
        %1451 = vmatprep.subr.bf16.mxu0 0
        %1452 = vmatpush1.bf16.xpose.msra.mxu0 0
        %1453 = vmatprep.subr.bf16.mxu0 0
        %1454 = vmatpush1.bf16.xpose.msra.mxu0 0
        %1455 = vmatprep.mubr.bf16.mxu0 0
        %1456 = vmatmul.mubr.bf16.gmra.mrb[0].mxu0 %v1409
        %v1457 = vpop.f32.mrb[0].mxu0
        %v1458 = vadd.f32 0.0, %v1457
        %v1459 = vpop.f32.mrb[0].mxu0
        %v1460 = vpop.f32.mrb[0].mxu0
        %v1461 = vpop.f32.mrb[0].mxu0
        %1462 = vdwg.mxu0
        %v1463 = vsel %vm1048, %v1458, -inf
        %1464 = vmax.xlane.f32.xlu0 %v1463
        %v1465 = vpop.xlane.xlu0 %1464
        %v1466 = vsub.f32 %v1458, %v1465
        %v1467 = vmul.f32 %v1466, 1.442695
        %v1468 = vpow.pop %v1467
        %v1469 = vsel %vm1048, %v1468, 0.0
        %1470 = vadd.xlane.f32.xlu0 %v1469
        %v1471 = vpop.xlane.xlu0 %1470
        %v1472 = vrcp.pop %v1471
        %v1473 = vmul.f32 %v1468, %v1472
        %v1474 = vpack.c.bf16 %v1473, %v1473
        %1475 = vrot.lane.b32.xlu0 %v988, 80
        %v1476 = vpop.permute.xlu0 %1475
        %1477 = vrot.lane.b32.xlu0 %v989, 80
        %v1478 = vpop.permute.xlu0 %1477
        %1479 = vrot.lane.b32.xlu0 %v990, 80
        %v1480 = vpop.permute.xlu0 %1479
        %1481 = vrot.lane.b32.xlu0 %v991, 80
        %v1482 = vpop.permute.xlu0 %1481
        %v1488 = vsel %vm1048, %v1474, 0
        %1490 = vmatprep.subr.bf16.mxu0 0
        %1491 = vmatpush1.bf16.msra.mxu0 %v1476
        %1492 = vmatprep.subr.bf16.mxu0 0
        %1493 = vmatpush1.bf16.msra.mxu0 %v1478
        %1494 = vmatprep.subr.bf16.mxu0 0
        %1495 = vmatpush1.bf16.msra.mxu0 %v1480
        %1496 = vmatprep.subr.bf16.mxu0 0
        %1497 = vmatpush1.bf16.msra.mxu0 %v1482
        %1498 = vmatprep.subr.bf16.mxu0 0
        %1499 = vmatpush1.bf16.msra.mxu0 0
        %1500 = vmatprep.subr.bf16.mxu0 0
        %1501 = vmatpush1.bf16.msra.mxu0 0
        %1502 = vmatprep.subr.bf16.mxu0 0
        %1503 = vmatpush1.bf16.msra.mxu0 0
        %1504 = vmatprep.subr.bf16.mxu0 0
        %1505 = vmatpush1.bf16.msra.mxu0 0
        %1506 = vmatprep.subr.bf16.mxu0 0
        %1507 = vmatpush1.bf16.msra.mxu0 0
        %1508 = vmatprep.subr.bf16.mxu0 0
        %1509 = vmatpush1.bf16.msra.mxu0 0
        %1510 = vmatprep.subr.bf16.mxu0 0
        %1511 = vmatpush1.bf16.msra.mxu0 0
        %1512 = vmatprep.subr.bf16.mxu0 0
        %1513 = vmatpush1.bf16.msra.mxu0 0
        %1514 = vmatprep.subr.bf16.mxu0 0
        %1515 = vmatpush1.bf16.msra.mxu0 0
        %1516 = vmatprep.subr.bf16.mxu0 0
        %1517 = vmatpush1.bf16.msra.mxu0 0
        %1518 = vmatprep.subr.bf16.mxu0 0
        %1519 = vmatpush1.bf16.msra.mxu0 0
        %1520 = vmatprep.subr.bf16.mxu0 0
        %1521 = vmatpush1.bf16.msra.mxu0 0
        %1522 = vmatprep.mubr.bf16.mxu0 0
        %1523 = vmatmul.mubr.bf16.gmra.mrb[0].mxu0 %v1488
        %v1524 = vpop.f32.mrb[0].mxu0
        %v1525 = vadd.f32 0.0, %v1524
        %v1526 = vpop.f32.mrb[0].mxu0
        %v1527 = vpop.f32.mrb[0].mxu0
        %v1528 = vpop.f32.mrb[0].mxu0
        %1529 = vdwg.mxu0
        %v1530 = vpack.c.bf16 %v1525, %v1525
        %v1532 = vunpack.c.l.b16 %v1530
        %v1533 = vpack.c.b16 %v1532, %v1532
        %1534 = vrot.lane.b32.xlu0 %v1533, 48
        %v1535 = vpop.permute.xlu0 %1534
        %vm1537 = vcmask 519552
        %1538 = vst.msk [vmem:[#allocation4] sm:$0xf] %vm1537, %v1535
        %1539 = vrot.lane.b32.xlu0 %v983, 64
        %v1540 = vpop.permute.xlu0 %1539
        %1541 = vrot.lane.b32.xlu0 %v984, 64
        %v1542 = vpop.permute.xlu0 %1541
        %1543 = vrot.lane.b32.xlu0 %v985, 64
        %v1544 = vpop.permute.xlu0 %1543
        %1545 = vrot.lane.b32.xlu0 %v986, 64
        %v1546 = vpop.permute.xlu0 %1545
        %1547 = vrot.lane.b32.xlu0 %v987, 64
        %v1548 = vpop.permute.xlu0 %1547
        %v1550 = vsel %vm992, %v1540, 0
        %v1553 = vsel %vm992, %v1542, 0
        %v1556 = vsel %vm992, %v1544, 0
        %v1559 = vsel %vm992, %v1546, 0
        %v1562 = vsel %vm992, %v1548, 0
        %1564 = vmatprep.subr.bf16.mxu0 0
        %1565 = vmatpush1.bf16.xpose.msra.mxu0 %v1553
        %1566 = vmatprep.subr.bf16.mxu0 0
        %1567 = vmatpush1.bf16.xpose.msra.mxu0 %v1556
        %1568 = vmatprep.subr.bf16.mxu0 0
        %1569 = vmatpush1.bf16.xpose.msra.mxu0 %v1559
        %1570 = vmatprep.subr.bf16.mxu0 0
        %1571 = vmatpush1.bf16.xpose.msra.mxu0 %v1562
        %1572 = vmatprep.subr.bf16.mxu0 0
        %1573 = vmatpush1.bf16.xpose.msra.mxu0 0
        %1574 = vmatprep.subr.bf16.mxu0 0
        %1575 = vmatpush1.bf16.xpose.msra.mxu0 0
        %1576 = vmatprep.subr.bf16.mxu0 0
        %1577 = vmatpush1.bf16.xpose.msra.mxu0 0
        %1578 = vmatprep.subr.bf16.mxu0 0
        %1579 = vmatpush1.bf16.xpose.msra.mxu0 0
        %1580 = vmatprep.subr.bf16.mxu0 0
        %1581 = vmatpush1.bf16.xpose.msra.mxu0 0
        %1582 = vmatprep.subr.bf16.mxu0 0
        %1583 = vmatpush1.bf16.xpose.msra.mxu0 0
        %1584 = vmatprep.subr.bf16.mxu0 0
        %1585 = vmatpush1.bf16.xpose.msra.mxu0 0
        %1586 = vmatprep.subr.bf16.mxu0 0
        %1587 = vmatpush1.bf16.xpose.msra.mxu0 0
        %1588 = vmatprep.subr.bf16.mxu0 0
        %1589 = vmatpush1.bf16.xpose.msra.mxu0 0
        %1590 = vmatprep.subr.bf16.mxu0 0
        %1591 = vmatpush1.bf16.xpose.msra.mxu0 0
        %1592 = vmatprep.subr.bf16.mxu0 0
        %1593 = vmatpush1.bf16.xpose.msra.mxu0 0
        %1594 = vmatprep.subr.bf16.mxu0 0
        %1595 = vmatpush1.bf16.xpose.msra.mxu0 0
        %1596 = vmatprep.mubr.bf16.mxu0 0
        %1597 = vmatmul.mubr.bf16.gmra.mrb[0].mxu0 %v1550
        %v1598 = vpop.f32.mrb[0].mxu0
        %v1599 = vadd.f32 0.0, %v1598
        %v1600 = vpop.f32.mrb[0].mxu0
        %v1601 = vpop.f32.mrb[0].mxu0
        %v1602 = vpop.f32.mrb[0].mxu0
        %1603 = vdwg.mxu0
        %v1604 = vsel %vm1048, %v1599, -inf
        %1605 = vmax.xlane.f32.xlu0 %v1604
        %v1606 = vpop.xlane.xlu0 %1605
        %v1607 = vsub.f32 %v1599, %v1606
        %v1608 = vmul.f32 %v1607, 1.442695
        %v1609 = vpow.pop %v1608
        %v1610 = vsel %vm1048, %v1609, 0.0
        %1611 = vadd.xlane.f32.xlu0 %v1610
        %v1612 = vpop.xlane.xlu0 %1611
        %v1613 = vrcp.pop %v1612
        %v1614 = vmul.f32 %v1609, %v1613
        %v1615 = vpack.c.bf16 %v1614, %v1614
        %1616 = vrot.lane.b32.xlu0 %v988, 64
        %v1617 = vpop.permute.xlu0 %1616
        %1618 = vrot.lane.b32.xlu0 %v989, 64
        %v1619 = vpop.permute.xlu0 %1618
        %1620 = vrot.lane.b32.xlu0 %v990, 64
        %v1621 = vpop.permute.xlu0 %1620
        %1622 = vrot.lane.b32.xlu0 %v991, 64
        %v1623 = vpop.permute.xlu0 %1622
        %v1629 = vsel %vm1048, %v1615, 0
        %1631 = vmatprep.subr.bf16.mxu0 0
        %1632 = vmatpush1.bf16.msra.mxu0 %v1617
        %1633 = vmatprep.subr.bf16.mxu0 0
        %1634 = vmatpush1.bf16.msra.mxu0 %v1619
        %1635 = vmatprep.subr.bf16.mxu0 0
        %1636 = vmatpush1.bf16.msra.mxu0 %v1621
        %1637 = vmatprep.subr.bf16.mxu0 0
        %1638 = vmatpush1.bf16.msra.mxu0 %v1623
        %1639 = vmatprep.subr.bf16.mxu0 0
        %1640 = vmatpush1.bf16.msra.mxu0 0
        %1641 = vmatprep.subr.bf16.mxu0 0
        %1642 = vmatpush1.bf16.msra.mxu0 0
        %1643 = vmatprep.subr.bf16.mxu0 0
        %1644 = vmatpush1.bf16.msra.mxu0 0
        %1645 = vmatprep.subr.bf16.mxu0 0
        %1646 = vmatpush1.bf16.msra.mxu0 0
        %1647 = vmatprep.subr.bf16.mxu0 0
        %1648 = vmatpush1.bf16.msra.mxu0 0
        %1649 = vmatprep.subr.bf16.mxu0 0
        %1650 = vmatpush1.bf16.msra.mxu0 0
        %1651 = vmatprep.subr.bf16.mxu0 0
        %1652 = vmatpush1.bf16.msra.mxu0 0
        %1653 = vmatprep.subr.bf16.mxu0 0
        %1654 = vmatpush1.bf16.msra.mxu0 0
        %1655 = vmatprep.subr.bf16.mxu0 0
        %1656 = vmatpush1.bf16.msra.mxu0 0
        %1657 = vmatprep.subr.bf16.mxu0 0
        %1658 = vmatpush1.bf16.msra.mxu0 0
        %1659 = vmatprep.subr.bf16.mxu0 0
        %1660 = vmatpush1.bf16.msra.mxu0 0
        %1661 = vmatprep.subr.bf16.mxu0 0
        %1662 = vmatpush1.bf16.msra.mxu0 0
        %1663 = vmatprep.mubr.bf16.mxu0 0
        %1664 = vmatmul.mubr.bf16.gmra.mrb[0].mxu0 %v1629
        %v1665 = vpop.f32.mrb[0].mxu0
        %v1666 = vadd.f32 0.0, %v1665
        %v1667 = vpop.f32.mrb[0].mxu0
        %v1668 = vpop.f32.mrb[0].mxu0
        %v1669 = vpop.f32.mrb[0].mxu0
        %1670 = vdwg.mxu0
        %v1671 = vpack.c.bf16 %v1666, %v1666
        %v1673 = vunpack.c.l.b16 %v1671
        %v1674 = vpack.c.b16 %v1673, %v1673
        %1675 = vrot.lane.b32.xlu0 %v1674, 64
        %v1676 = vpop.permute.xlu0 %1675
        %vm1678 = vcmask 650752
        %1679 = vst.msk [vmem:[#allocation4] sm:$0xf] %vm1678, %v1676
        %1680 = vrot.lane.b32.xlu0 %v983, 48
        %v1681 = vpop.permute.xlu0 %1680
        %1682 = vrot.lane.b32.xlu0 %v984, 48
        %v1683 = vpop.permute.xlu0 %1682
        %1684 = vrot.lane.b32.xlu0 %v985, 48
        %v1685 = vpop.permute.xlu0 %1684
        %1686 = vrot.lane.b32.xlu0 %v986, 48
        %v1687 = vpop.permute.xlu0 %1686
        %1688 = vrot.lane.b32.xlu0 %v987, 48
        %v1689 = vpop.permute.xlu0 %1688
        %v1691 = vsel %vm992, %v1681, 0
        %v1694 = vsel %vm992, %v1683, 0
        %v1697 = vsel %vm992, %v1685, 0
        %v1700 = vsel %vm992, %v1687, 0
        %v1703 = vsel %vm992, %v1689, 0
        %1705 = vmatprep.subr.bf16.mxu0 0
        %1706 = vmatpush1.bf16.xpose.msra.mxu0 %v1694
        %1707 = vmatprep.subr.bf16.mxu0 0
        %1708 = vmatpush1.bf16.xpose.msra.mxu0 %v1697
        %1709 = vmatprep.subr.bf16.mxu0 0
        %1710 = vmatpush1.bf16.xpose.msra.mxu0 %v1700
        %1711 = vmatprep.subr.bf16.mxu0 0
        %1712 = vmatpush1.bf16.xpose.msra.mxu0 %v1703
        %1713 = vmatprep.subr.bf16.mxu0 0
        %1714 = vmatpush1.bf16.xpose.msra.mxu0 0
        %1715 = vmatprep.subr.bf16.mxu0 0
        %1716 = vmatpush1.bf16.xpose.msra.mxu0 0
        %1717 = vmatprep.subr.bf16.mxu0 0
        %1718 = vmatpush1.bf16.xpose.msra.mxu0 0
        %1719 = vmatprep.subr.bf16.mxu0 0
        %1720 = vmatpush1.bf16.xpose.msra.mxu0 0
        %1721 = vmatprep.subr.bf16.mxu0 0
        %1722 = vmatpush1.bf16.xpose.msra.mxu0 0
        %1723 = vmatprep.subr.bf16.mxu0 0
        %1724 = vmatpush1.bf16.xpose.msra.mxu0 0
        %1725 = vmatprep.subr.bf16.mxu0 0
        %1726 = vmatpush1.bf16.xpose.msra.mxu0 0
        %1727 = vmatprep.subr.bf16.mxu0 0
        %1728 = vmatpush1.bf16.xpose.msra.mxu0 0
        %1729 = vmatprep.subr.bf16.mxu0 0
        %1730 = vmatpush1.bf16.xpose.msra.mxu0 0
        %1731 = vmatprep.subr.bf16.mxu0 0
        %1732 = vmatpush1.bf16.xpose.msra.mxu0 0
        %1733 = vmatprep.subr.bf16.mxu0 0
        %1734 = vmatpush1.bf16.xpose.msra.mxu0 0
        %1735 = vmatprep.subr.bf16.mxu0 0
        %1736 = vmatpush1.bf16.xpose.msra.mxu0 0
        %1737 = vmatprep.mubr.bf16.mxu0 0
        %1738 = vmatmul.mubr.bf16.gmra.mrb[0].mxu0 %v1691
        %v1739 = vpop.f32.mrb[0].mxu0
        %v1740 = vadd.f32 0.0, %v1739
        %v1741 = vpop.f32.mrb[0].mxu0
        %v1742 = vpop.f32.mrb[0].mxu0
        %v1743 = vpop.f32.mrb[0].mxu0
        %1744 = vdwg.mxu0
        %v1745 = vsel %vm1048, %v1740, -inf
        %1746 = vmax.xlane.f32.xlu0 %v1745
        %v1747 = vpop.xlane.xlu0 %1746
        %v1748 = vsub.f32 %v1740, %v1747
        %v1749 = vmul.f32 %v1748, 1.442695
        %v1750 = vpow.pop %v1749
        %v1751 = vsel %vm1048, %v1750, 0.0
        %1752 = vadd.xlane.f32.xlu0 %v1751
        %v1753 = vpop.xlane.xlu0 %1752
        %v1754 = vrcp.pop %v1753
        %v1755 = vmul.f32 %v1750, %v1754
        %v1756 = vpack.c.bf16 %v1755, %v1755
        %1757 = vrot.lane.b32.xlu0 %v988, 48
        %v1758 = vpop.permute.xlu0 %1757
        %1759 = vrot.lane.b32.xlu0 %v989, 48
        %v1760 = vpop.permute.xlu0 %1759
        %1761 = vrot.lane.b32.xlu0 %v990, 48
        %v1762 = vpop.permute.xlu0 %1761
        %1763 = vrot.lane.b32.xlu0 %v991, 48
        %v1764 = vpop.permute.xlu0 %1763
        %v1770 = vsel %vm1048, %v1756, 0
        %1772 = vmatprep.subr.bf16.mxu0 0
        %1773 = vmatpush1.bf16.msra.mxu0 %v1758
        %1774 = vmatprep.subr.bf16.mxu0 0
        %1775 = vmatpush1.bf16.msra.mxu0 %v1760
        %1776 = vmatprep.subr.bf16.mxu0 0
        %1777 = vmatpush1.bf16.msra.mxu0 %v1762
        %1778 = vmatprep.subr.bf16.mxu0 0
        %1779 = vmatpush1.bf16.msra.mxu0 %v1764
        %1780 = vmatprep.subr.bf16.mxu0 0
        %1781 = vmatpush1.bf16.msra.mxu0 0
        %1782 = vmatprep.subr.bf16.mxu0 0
        %1783 = vmatpush1.bf16.msra.mxu0 0
        %1784 = vmatprep.subr.bf16.mxu0 0
        %1785 = vmatpush1.bf16.msra.mxu0 0
        %1786 = vmatprep.subr.bf16.mxu0 0
        %1787 = vmatpush1.bf16.msra.mxu0 0
        %1788 = vmatprep.subr.bf16.mxu0 0
        %1789 = vmatpush1.bf16.msra.mxu0 0
        %1790 = vmatprep.subr.bf16.mxu0 0
        %1791 = vmatpush1.bf16.msra.mxu0 0
        %1792 = vmatprep.subr.bf16.mxu0 0
        %1793 = vmatpush1.bf16.msra.mxu0 0
        %1794 = vmatprep.subr.bf16.mxu0 0
        %1795 = vmatpush1.bf16.msra.mxu0 0
        %1796 = vmatprep.subr.bf16.mxu0 0
        %1797 = vmatpush1.bf16.msra.mxu0 0
        %1798 = vmatprep.subr.bf16.mxu0 0
        %1799 = vmatpush1.bf16.msra.mxu0 0
        %1800 = vmatprep.subr.bf16.mxu0 0
        %1801 = vmatpush1.bf16.msra.mxu0 0
        %1802 = vmatprep.subr.bf16.mxu0 0
        %1803 = vmatpush1.bf16.msra.mxu0 0
        %1804 = vmatprep.mubr.bf16.mxu0 0
        %1805 = vmatmul.mubr.bf16.gmra.mrb[0].mxu0 %v1770
        %v1806 = vpop.f32.mrb[0].mxu0
        %v1807 = vadd.f32 0.0, %v1806
        %v1808 = vpop.f32.mrb[0].mxu0
        %v1809 = vpop.f32.mrb[0].mxu0
        %v1810 = vpop.f32.mrb[0].mxu0
        %1811 = vdwg.mxu0
        %v1812 = vpack.c.bf16 %v1807, %v1807
        %v1814 = vunpack.c.l.b16 %v1812
        %v1815 = vpack.c.b16 %v1814, %v1814
        %1816 = vrot.lane.b32.xlu0 %v1815, 80
        %v1817 = vpop.permute.xlu0 %1816
        %vm1819 = vcmask 781952
        %1820 = vst.msk [vmem:[#allocation4] sm:$0xf] %vm1819, %v1817
        %1821 = vrot.lane.b32.xlu0 %v983, 32
        %v1822 = vpop.permute.xlu0 %1821
        %1823 = vrot.lane.b32.xlu0 %v984, 32
        %v1824 = vpop.permute.xlu0 %1823
        %1825 = vrot.lane.b32.xlu0 %v985, 32
        %v1826 = vpop.permute.xlu0 %1825
        %1827 = vrot.lane.b32.xlu0 %v986, 32
        %v1828 = vpop.permute.xlu0 %1827
        %1829 = vrot.lane.b32.xlu0 %v987, 32
        %v1830 = vpop.permute.xlu0 %1829
        %v1832 = vsel %vm992, %v1822, 0
        %v1835 = vsel %vm992, %v1824, 0
        %v1838 = vsel %vm992, %v1826, 0
        %v1841 = vsel %vm992, %v1828, 0
        %v1844 = vsel %vm992, %v1830, 0
        %1846 = vmatprep.subr.bf16.mxu0 0
        %1847 = vmatpush1.bf16.xpose.msra.mxu0 %v1835
        %1848 = vmatprep.subr.bf16.mxu0 0
        %1849 = vmatpush1.bf16.xpose.msra.mxu0 %v1838
        %1850 = vmatprep.subr.bf16.mxu0 0
        %1851 = vmatpush1.bf16.xpose.msra.mxu0 %v1841
        %1852 = vmatprep.subr.bf16.mxu0 0
        %1853 = vmatpush1.bf16.xpose.msra.mxu0 %v1844
        %1854 = vmatprep.subr.bf16.mxu0 0
        %1855 = vmatpush1.bf16.xpose.msra.mxu0 0
        %1856 = vmatprep.subr.bf16.mxu0 0
        %1857 = vmatpush1.bf16.xpose.msra.mxu0 0
        %1858 = vmatprep.subr.bf16.mxu0 0
        %1859 = vmatpush1.bf16.xpose.msra.mxu0 0
        %1860 = vmatprep.subr.bf16.mxu0 0
        %1861 = vmatpush1.bf16.xpose.msra.mxu0 0
        %1862 = vmatprep.subr.bf16.mxu0 0
        %1863 = vmatpush1.bf16.xpose.msra.mxu0 0
        %1864 = vmatprep.subr.bf16.mxu0 0
        %1865 = vmatpush1.bf16.xpose.msra.mxu0 0
        %1866 = vmatprep.subr.bf16.mxu0 0
        %1867 = vmatpush1.bf16.xpose.msra.mxu0 0
        %1868 = vmatprep.subr.bf16.mxu0 0
        %1869 = vmatpush1.bf16.xpose.msra.mxu0 0
        %1870 = vmatprep.subr.bf16.mxu0 0
        %1871 = vmatpush1.bf16.xpose.msra.mxu0 0
        %1872 = vmatprep.subr.bf16.mxu0 0
        %1873 = vmatpush1.bf16.xpose.msra.mxu0 0
        %1874 = vmatprep.subr.bf16.mxu0 0
        %1875 = vmatpush1.bf16.xpose.msra.mxu0 0
        %1876 = vmatprep.subr.bf16.mxu0 0
        %1877 = vmatpush1.bf16.xpose.msra.mxu0 0
        %1878 = vmatprep.mubr.bf16.mxu0 0
        %1879 = vmatmul.mubr.bf16.gmra.mrb[0].mxu0 %v1832
        %v1880 = vpop.f32.mrb[0].mxu0
        %v1881 = vadd.f32 0.0, %v1880
        %v1882 = vpop.f32.mrb[0].mxu0
        %v1883 = vpop.f32.mrb[0].mxu0
        %v1884 = vpop.f32.mrb[0].mxu0
        %1885 = vdwg.mxu0
        %v1886 = vsel %vm1048, %v1881, -inf
        %1887 = vmax.xlane.f32.xlu0 %v1886
        %v1888 = vpop.xlane.xlu0 %1887
        %v1889 = vsub.f32 %v1881, %v1888
        %v1890 = vmul.f32 %v1889, 1.442695
        %v1891 = vpow.pop %v1890
        %v1892 = vsel %vm1048, %v1891, 0.0
        %1893 = vadd.xlane.f32.xlu0 %v1892
        %v1894 = vpop.xlane.xlu0 %1893
        %v1895 = vrcp.pop %v1894
        %v1896 = vmul.f32 %v1891, %v1895
        %v1897 = vpack.c.bf16 %v1896, %v1896
        %1898 = vrot.lane.b32.xlu0 %v988, 32
        %v1899 = vpop.permute.xlu0 %1898
        %1900 = vrot.lane.b32.xlu0 %v989, 32
        %v1901 = vpop.permute.xlu0 %1900
        %1902 = vrot.lane.b32.xlu0 %v990, 32
        %v1903 = vpop.permute.xlu0 %1902
        %1904 = vrot.lane.b32.xlu0 %v991, 32
        %v1905 = vpop.permute.xlu0 %1904
        %v1911 = vsel %vm1048, %v1897, 0
        %1913 = vmatprep.subr.bf16.mxu0 0
        %1914 = vmatpush1.bf16.msra.mxu0 %v1899
        %1915 = vmatprep.subr.bf16.mxu0 0
        %1916 = vmatpush1.bf16.msra.mxu0 %v1901
        %1917 = vmatprep.subr.bf16.mxu0 0
        %1918 = vmatpush1.bf16.msra.mxu0 %v1903
        %1919 = vmatprep.subr.bf16.mxu0 0
        %1920 = vmatpush1.bf16.msra.mxu0 %v1905
        %1921 = vmatprep.subr.bf16.mxu0 0
        %1922 = vmatpush1.bf16.msra.mxu0 0
        %1923 = vmatprep.subr.bf16.mxu0 0
        %1924 = vmatpush1.bf16.msra.mxu0 0
        %1925 = vmatprep.subr.bf16.mxu0 0
        %1926 = vmatpush1.bf16.msra.mxu0 0
        %1927 = vmatprep.subr.bf16.mxu0 0
        %1928 = vmatpush1.bf16.msra.mxu0 0
        %1929 = vmatprep.subr.bf16.mxu0 0
        %1930 = vmatpush1.bf16.msra.mxu0 0
        %1931 = vmatprep.subr.bf16.mxu0 0
        %1932 = vmatpush1.bf16.msra.mxu0 0
        %1933 = vmatprep.subr.bf16.mxu0 0
        %1934 = vmatpush1.bf16.msra.mxu0 0
        %1935 = vmatprep.subr.bf16.mxu0 0
        %1936 = vmatpush1.bf16.msra.mxu0 0
        %1937 = vmatprep.subr.bf16.mxu0 0
        %1938 = vmatpush1.bf16.msra.mxu0 0
        %1939 = vmatprep.subr.bf16.mxu0 0
        %1940 = vmatpush1.bf16.msra.mxu0 0
        %1941 = vmatprep.subr.bf16.mxu0 0
        %1942 = vmatpush1.bf16.msra.mxu0 0
        %1943 = vmatprep.subr.bf16.mxu0 0
        %1944 = vmatpush1.bf16.msra.mxu0 0
        %1945 = vmatprep.mubr.bf16.mxu0 0
        %1946 = vmatmul.mubr.bf16.gmra.mrb[0].mxu0 %v1911
        %v1947 = vpop.f32.mrb[0].mxu0
        %v1948 = vadd.f32 0.0, %v1947
        %v1949 = vpop.f32.mrb[0].mxu0
        %v1950 = vpop.f32.mrb[0].mxu0
        %v1951 = vpop.f32.mrb[0].mxu0
        %1952 = vdwg.mxu0
        %v1953 = vpack.c.bf16 %v1948, %v1948
        %v1955 = vunpack.c.l.b16 %v1953
        %v1956 = vpack.c.b16 %v1955, %v1955
        %1957 = vrot.lane.b32.xlu0 %v1956, 96
        %v1958 = vpop.permute.xlu0 %1957
        %vm1960 = vcmask 913152
        %1961 = vst.msk [vmem:[#allocation4] sm:$0xf] %vm1960, %v1958
        %1962 = vrot.lane.b32.xlu0 %v983, 16
        %v1963 = vpop.permute.xlu0 %1962
        %1964 = vrot.lane.b32.xlu0 %v984, 16
        %v1965 = vpop.permute.xlu0 %1964
        %1966 = vrot.lane.b32.xlu0 %v985, 16
        %v1967 = vpop.permute.xlu0 %1966
        %1968 = vrot.lane.b32.xlu0 %v986, 16
        %v1969 = vpop.permute.xlu0 %1968
        %1970 = vrot.lane.b32.xlu0 %v987, 16
        %v1971 = vpop.permute.xlu0 %1970
        %v1973 = vsel %vm992, %v1963, 0
        %v1976 = vsel %vm992, %v1965, 0
        %v1979 = vsel %vm992, %v1967, 0
        %v1982 = vsel %vm992, %v1969, 0
        %v1985 = vsel %vm992, %v1971, 0
        %1987 = vmatprep.subr.bf16.mxu0 0
        %1988 = vmatpush1.bf16.xpose.msra.mxu0 %v1976
        %1989 = vmatprep.subr.bf16.mxu0 0
        %1990 = vmatpush1.bf16.xpose.msra.mxu0 %v1979
        %1991 = vmatprep.subr.bf16.mxu0 0
        %1992 = vmatpush1.bf16.xpose.msra.mxu0 %v1982
        %1993 = vmatprep.subr.bf16.mxu0 0
        %1994 = vmatpush1.bf16.xpose.msra.mxu0 %v1985
        %1995 = vmatprep.subr.bf16.mxu0 0
        %1996 = vmatpush1.bf16.xpose.msra.mxu0 0
        %1997 = vmatprep.subr.bf16.mxu0 0
        %1998 = vmatpush1.bf16.xpose.msra.mxu0 0
        %1999 = vmatprep.subr.bf16.mxu0 0
        %2000 = vmatpush1.bf16.xpose.msra.mxu0 0
        %2001 = vmatprep.subr.bf16.mxu0 0
        %2002 = vmatpush1.bf16.xpose.msra.mxu0 0
        %2003 = vmatprep.subr.bf16.mxu0 0
        %2004 = vmatpush1.bf16.xpose.msra.mxu0 0
        %2005 = vmatprep.subr.bf16.mxu0 0
        %2006 = vmatpush1.bf16.xpose.msra.mxu0 0
        %2007 = vmatprep.subr.bf16.mxu0 0
        %2008 = vmatpush1.bf16.xpose.msra.mxu0 0
        %2009 = vmatprep.subr.bf16.mxu0 0
        %2010 = vmatpush1.bf16.xpose.msra.mxu0 0
        %2011 = vmatprep.subr.bf16.mxu0 0
        %2012 = vmatpush1.bf16.xpose.msra.mxu0 0
        %2013 = vmatprep.subr.bf16.mxu0 0
        %2014 = vmatpush1.bf16.xpose.msra.mxu0 0
        %2015 = vmatprep.subr.bf16.mxu0 0
        %2016 = vmatpush1.bf16.xpose.msra.mxu0 0
        %2017 = vmatprep.subr.bf16.mxu0 0
        %2018 = vmatpush1.bf16.xpose.msra.mxu0 0
        %2019 = vmatprep.mubr.bf16.mxu0 0
        %2020 = vmatmul.mubr.bf16.gmra.mrb[0].mxu0 %v1973
        %v2021 = vpop.f32.mrb[0].mxu0
        %v2022 = vadd.f32 0.0, %v2021
        %v2023 = vpop.f32.mrb[0].mxu0
        %v2024 = vpop.f32.mrb[0].mxu0
        %v2025 = vpop.f32.mrb[0].mxu0
        %2026 = vdwg.mxu0
        %v2027 = vsel %vm1048, %v2022, -inf
        %2028 = vmax.xlane.f32.xlu0 %v2027
        %v2029 = vpop.xlane.xlu0 %2028
        %v2030 = vsub.f32 %v2022, %v2029
        %v2031 = vmul.f32 %v2030, 1.442695
        %v2032 = vpow.pop %v2031
        %v2033 = vsel %vm1048, %v2032, 0.0
        %2034 = vadd.xlane.f32.xlu0 %v2033
        %v2035 = vpop.xlane.xlu0 %2034
        %v2036 = vrcp.pop %v2035
        %v2037 = vmul.f32 %v2032, %v2036
        %v2038 = vpack.c.bf16 %v2037, %v2037
        %2039 = vrot.lane.b32.xlu0 %v988, 16
        %v2040 = vpop.permute.xlu0 %2039
        %2041 = vrot.lane.b32.xlu0 %v989, 16
        %v2042 = vpop.permute.xlu0 %2041
        %2043 = vrot.lane.b32.xlu0 %v990, 16
        %v2044 = vpop.permute.xlu0 %2043
        %2045 = vrot.lane.b32.xlu0 %v991, 16
        %v2046 = vpop.permute.xlu0 %2045
        %v2052 = vsel %vm1048, %v2038, 0
        %2054 = vmatprep.subr.bf16.mxu0 0
        %2055 = vmatpush1.bf16.msra.mxu0 %v2040
        %2056 = vmatprep.subr.bf16.mxu0 0
        %2057 = vmatpush1.bf16.msra.mxu0 %v2042
        %2058 = vmatprep.subr.bf16.mxu0 0
        %2059 = vmatpush1.bf16.msra.mxu0 %v2044
        %2060 = vmatprep.subr.bf16.mxu0 0
        %2061 = vmatpush1.bf16.msra.mxu0 %v2046
        %2062 = vmatprep.subr.bf16.mxu0 0
        %2063 = vmatpush1.bf16.msra.mxu0 0
        %2064 = vmatprep.subr.bf16.mxu0 0
        %2065 = vmatpush1.bf16.msra.mxu0 0
        %2066 = vmatprep.subr.bf16.mxu0 0
        %2067 = vmatpush1.bf16.msra.mxu0 0
        %2068 = vmatprep.subr.bf16.mxu0 0
        %2069 = vmatpush1.bf16.msra.mxu0 0
        %2070 = vmatprep.subr.bf16.mxu0 0
        %2071 = vmatpush1.bf16.msra.mxu0 0
        %2072 = vmatprep.subr.bf16.mxu0 0
        %2073 = vmatpush1.bf16.msra.mxu0 0
        %2074 = vmatprep.subr.bf16.mxu0 0
        %2075 = vmatpush1.bf16.msra.mxu0 0
        %2076 = vmatprep.subr.bf16.mxu0 0
        %2077 = vmatpush1.bf16.msra.mxu0 0
        %2078 = vmatprep.subr.bf16.mxu0 0
        %2079 = vmatpush1.bf16.msra.mxu0 0
        %2080 = vmatprep.subr.bf16.mxu0 0
        %2081 = vmatpush1.bf16.msra.mxu0 0
        %2082 = vmatprep.subr.bf16.mxu0 0
        %2083 = vmatpush1.bf16.msra.mxu0 0
        %2084 = vmatprep.subr.bf16.mxu0 0
        %2085 = vmatpush1.bf16.msra.mxu0 0
        %2086 = vmatprep.mubr.bf16.mxu0 0
        %2087 = vmatmul.mubr.bf16.gmra.mrb[0].mxu0 %v2052
        %v2088 = vpop.f32.mrb[0].mxu0
        %v2089 = vadd.f32 0.0, %v2088
        %v2090 = vpop.f32.mrb[0].mxu0
        %v2091 = vpop.f32.mrb[0].mxu0
        %v2092 = vpop.f32.mrb[0].mxu0
        %2093 = vdwg.mxu0
        %v2094 = vpack.c.bf16 %v2089, %v2089
        %v2096 = vunpack.c.l.b16 %v2094
        %v2097 = vpack.c.b16 %v2096, %v2096
        %2098 = vrot.lane.b32.xlu0 %v2097, 112
        %v2099 = vpop.permute.xlu0 %2098
        %vm2101 = vcmask 1044352
        %2102 = vst.msk [vmem:[#allocation4] sm:$0xf] %vm2101, %v2099
        %v2103 = vld [vmem:[#allocation4] sm:$0xf]
        %v2104 = vld [vmem:[#allocation14] sm:$0xff]
        %v2105 = vld [vmem:[#allocation14 + $0x8] sm:$0xff]
        %v2106 = vld [vmem:[#allocation14 + $0x10] sm:$0xff]
        %v2107 = vld [vmem:[#allocation14 + $0x18] sm:$0xff]
        %v2108 = vld [vmem:[#allocation14 + $0x20] sm:$0xff]
        %v2109 = vld [vmem:[#allocation14 + $0x28] sm:$0xff]
        %v2110 = vld [vmem:[#allocation14 + $0x30] sm:$0xff]
        %v2111 = vld [vmem:[#allocation14 + $0x38] sm:$0xff]
        %v2112 = vld [vmem:[#allocation14 + $0x40] sm:$0xff]
        %v2113 = vld [vmem:[#allocation14 + $0x48] sm:$0xff]
        %v2114 = vld [vmem:[#allocation14 + $0x50] sm:$0xff]
        %v2115 = vld [vmem:[#allocation14 + $0x58] sm:$0xff]
        %v2116 = vld [vmem:[#allocation14 + $0x60] sm:$0xff]
        %v2117 = vld [vmem:[#allocation14 + $0x68] sm:$0xff]
        %v2118 = vld [vmem:[#allocation14 + $0x70] sm:$0xff]
        %v2119 = vld [vmem:[#allocation14 + $0x78] sm:$0xff]
        %v2120 = vld [vmem:[%s8] sm:$0x3]
        %v2122 = vlaneseq
        %v2123 = vshrl.u32 %v2122, 7
        %v2124 = vsub.s32 0, %v2123
        %v2125 = vrot.slane %v2120, %v2124
        %v2126 = vlaneseq
        %v2127 = vshrl.u32 %v2126, 7
        %v2128 = vsub.s32 1, %v2127
        %v2129 = vrot.slane %v2120, %v2128
        %v2148 = vunpack.c.l.b16 %v2104
        %v2149 = vunpack.c.h.b16 %v2104
        %v2150 = vunpack.c.l.b16 %v2105
        %v2151 = vunpack.c.h.b16 %v2105
        %v2152 = vunpack.c.l.b16 %v2106
        %v2153 = vunpack.c.h.b16 %v2106
        %v2154 = vunpack.c.l.b16 %v2107
        %v2155 = vunpack.c.h.b16 %v2107
        %v2156 = vunpack.c.l.b16 %v2108
        %v2157 = vunpack.c.h.b16 %v2108
        %v2158 = vunpack.c.l.b16 %v2109
        %v2159 = vunpack.c.h.b16 %v2109
        %v2160 = vunpack.c.l.b16 %v2110
        %v2161 = vunpack.c.h.b16 %v2110
        %v2162 = vunpack.c.l.b16 %v2111
        %v2163 = vunpack.c.h.b16 %v2111
        %v2164 = vunpack.c.l.b16 %v2112
        %v2165 = vunpack.c.h.b16 %v2112
        %v2166 = vunpack.c.l.b16 %v2113
        %v2167 = vunpack.c.h.b16 %v2113
        %v2168 = vunpack.c.l.b16 %v2114
        %v2169 = vunpack.c.h.b16 %v2114
        %v2170 = vunpack.c.l.b16 %v2115
        %v2171 = vunpack.c.h.b16 %v2115
        %v2172 = vunpack.c.l.b16 %v2116
        %v2173 = vunpack.c.h.b16 %v2116
        %v2174 = vunpack.c.l.b16 %v2117
        %v2175 = vunpack.c.h.b16 %v2117
        %v2176 = vunpack.c.l.b16 %v2118
        %v2177 = vunpack.c.h.b16 %v2118
        %v2178 = vunpack.c.l.b16 %v2119
        %v2179 = vunpack.c.h.b16 %v2119
        %v2180 = vpack.c.b16 %v2150, %v2148
        %v2181 = vpack.c.b16 %v2151, %v2149
        %v2182 = vpack.c.b16 %v2154, %v2152
        %v2183 = vpack.c.b16 %v2155, %v2153
        %v2184 = vpack.c.b16 %v2158, %v2156
        %v2185 = vpack.c.b16 %v2159, %v2157
        %v2186 = vpack.c.b16 %v2162, %v2160
        %v2187 = vpack.c.b16 %v2163, %v2161
        %v2188 = vpack.c.b16 %v2166, %v2164
        %v2189 = vpack.c.b16 %v2167, %v2165
        %v2190 = vpack.c.b16 %v2170, %v2168
        %v2191 = vpack.c.b16 %v2171, %v2169
        %v2192 = vpack.c.b16 %v2174, %v2172
        %v2193 = vpack.c.b16 %v2175, %v2173
        %v2194 = vpack.c.b16 %v2178, %v2176
        %v2195 = vpack.c.b16 %v2179, %v2177
        %2212 = vmatprep.subr.bf16.mxu0 %v2181
        %2213 = vmatpush1.bf16.msra.mxu0 %v2180
        %2214 = vmatprep.subr.bf16.mxu0 %v2183
        %2215 = vmatpush1.bf16.msra.mxu0 %v2182
        %2216 = vmatprep.subr.bf16.mxu0 %v2185
        %2217 = vmatpush1.bf16.msra.mxu0 %v2184
        %2218 = vmatprep.subr.bf16.mxu0 %v2187
        %2219 = vmatpush1.bf16.msra.mxu0 %v2186
        %2220 = vmatprep.subr.bf16.mxu0 %v2189
        %2221 = vmatpush1.bf16.msra.mxu0 %v2188
        %2222 = vmatprep.subr.bf16.mxu0 %v2191
        %2223 = vmatpush1.bf16.msra.mxu0 %v2190
        %2224 = vmatprep.subr.bf16.mxu0 %v2193
        %2225 = vmatpush1.bf16.msra.mxu0 %v2192
        %2226 = vmatprep.subr.bf16.mxu0 %v2195
        %2227 = vmatpush1.bf16.msra.mxu0 %v2194
        %2228 = vmatprep.subr.bf16.mxu0 0
        %2229 = vmatpush1.bf16.msra.mxu0 0
        %2230 = vmatprep.subr.bf16.mxu0 0
        %2231 = vmatpush1.bf16.msra.mxu0 0
        %2232 = vmatprep.subr.bf16.mxu0 0
        %2233 = vmatpush1.bf16.msra.mxu0 0
        %2234 = vmatprep.subr.bf16.mxu0 0
        %2235 = vmatpush1.bf16.msra.mxu0 0
        %2236 = vmatprep.subr.bf16.mxu0 0
        %2237 = vmatpush1.bf16.msra.mxu0 0
        %2238 = vmatprep.subr.bf16.mxu0 0
        %2239 = vmatpush1.bf16.msra.mxu0 0
        %2240 = vmatprep.subr.bf16.mxu0 0
        %2241 = vmatpush1.bf16.msra.mxu0 0
        %2242 = vmatprep.subr.bf16.mxu0 0
        %2243 = vmatpush1.bf16.msra.mxu0 0
        %2244 = vmatprep.mubr.bf16.mxu0 0
        %2245 = vmatmul.mubr.bf16.gmra.mrb[0].mxu0 %v2103
        %v2246 = vpop.f32.mrb[0].mxu0
        %v2247 = vadd.f32 %v2125, %v2246
        %v2248 = vpop.f32.mrb[0].mxu0
        %v2249 = vadd.f32 %v2129, %v2248
        %v2250 = vpop.f32.mrb[0].mxu0
        %v2251 = vpop.f32.mrb[0].mxu0
        %2252 = vdwg.mxu0
        %2253 = vst [vmem:[%s464] sm:$0xff] %v2247
        %2254 = vst [vmem:[%s464 + $0x8] sm:$0xff] %v2249
        %s2255 = sand.u32 %s254, 1
        %s2256 = scalar_lea.sflag [#allocation7], %s2255
        %s2257 = sand.u32 %s254, 1
        %s2258 = smul.addr %s2257, 16
        %s2259 = scalar_lea.vmem [#allocation16], %s2258
        // Predicated region
        $region85: #{tpu_custom_call.1} parent=55 // pred_check
          %p2260 = pneg %p264
        $region86: #{tpu_custom_call.1} parent=55 // pred_check_branch
          %2262 = sbr.rel (%p2260) target = $region88
        $region87: #{tpu_custom_call.1} parent=55 // pred_region
          %s2264 = ssub.s32 256, 256
          %2265 = vsyncadd %s2256, %s2264
          %s2266 = smul.addr %s36, 2
          %s2267 = smul.addr %s35, 2
          %s2268 = sadd.s32 %s2266, %s2267
          %s2269 = smul.addr %s2268, 128
          %s2270 = scalar_lea.hbm %s9, %s2269
          %s2272 = sshll.u32 %s2259, 4
          %s2273 = int_to_ptr.vmem [resolvable:$true] %s2272
          %2275 = dma.vmem_to_hbm [thread:$0]  %s2273, 256, %s2270, %s2256
        $region88: #{tpu_custom_call.1} parent=55 // pred_fallthru
          _
      $region56: #{tpu_custom_call.1} parent=5 // pred_fallthru
        _
      %p2276 = scmp.le.s32.totalorder 2, %s26
      // Predicated region
      $region89: #{tpu_custom_call.1} parent=5 // pred_check
        %p2277 = pneg %p2276
      $region90: #{tpu_custom_call.1} parent=5 // pred_check_branch
        %2279 = sbr.rel (%p2277) target = $region92
      $region91: #{tpu_custom_call.1} parent=5 // pred_region
        %s2280 = ssub.s32 %s26, 2
        // Predicated region
        $region93: #{tpu_custom_call.1} parent=91 // pred_check
          %p2281 = pneg %p270
        $region94: #{tpu_custom_call.1} parent=91 // pred_check_branch
          %2283 = sbr.rel (%p2281) target = $region96
        $region95: #{tpu_custom_call.1} parent=91 // pred_region
          %s2284 = sand.u32 %s255, 1
          %s2285 = scalar_lea.sflag [#allocation7], %s2284
          %s2286 = sand.u32 %s255, 1
          %s2287 = smul.addr %s2286, 16
          %s2288 = scalar_lea.vmem [#allocation16], %s2287
          %2289 = dma.done %s2285, 256
        $region96: #{tpu_custom_call.1} parent=91 // pred_fallthru
          _
      $region92: #{tpu_custom_call.1} parent=5 // pred_fallthru
        _
    $region6: #{tpu_custom_call.1} parent=1 // loop_footer
      %s30 = sadd.s32 1, %s26
    $region7: #{tpu_custom_call.1} parent=1 // loop_footer_branch
      %25 = sbr.rel target = $region3
    $region8: #{tpu_custom_call.1} parent=1 // loop_exit
      _
    %2290 = vsyncpa [#allocation6], 1
    %s2291 = scalar_lea.sflag [#allocation6], 1
    %2292 = vsyncpa %s2291, 1
    %2293 = vsyncpa [#allocation9], 1
    %s2294 = scalar_lea.sflag [#allocation9], 1
    %2295 = vsyncpa %s2294, 1
    %2296 = vsyncpa [#allocation12], 1
    %2297 = vsyncpa [#allocation15], 1
    %2298 = vsyncpa [#allocation7], 1
    %s2299 = scalar_lea.sflag [#allocation7], 1
    %2300 = vsyncpa %s2299, 1

</llo_original>
